<compile_context>
chip_gen: v6e
topology: v6e:2x2x1
jax: 0.10.0
libtpu: 0.0.40
codegen_flags: <defaults>
</compile_context>

<pallas_src>
import numpy as np

import jax
import jax.numpy as jnp
from jax import lax
from jax.experimental import pallas as pl
from jax.experimental.pallas import tpu as pltpu


# ----------------------------------------------------------------------------
# Fused kernel: one (sample n, depth tile t) step computes TD output depths.
# ----------------------------------------------------------------------------

def _bottleneck_fused_kernel(x_hbm, w1_ref, w2_ref, w3_ref,
                             s1_ref, b1_ref, s2_ref, b2_ref, s3_ref, b3_ref,
                             o_ref, xh_ref, p1_ref, sem):
    """Args:
      x_hbm  : (N, D, H, W*Cin)        full input, left in HBM (pl.ANY)
      w1_ref : (W*Cin, W*P)            conv1, block-diagonal over folded W (bf16)
      w2_ref : (3, 3*W*P, W*P)         conv2, per-kd block-banded over W (bf16)
      w3_ref : (W*P, W*Cout)           conv3, block-diagonal over folded W (bf16)
      s*/b*  : (1, W*C)                BN scale / bias tiled over W (f32)
      o_ref  : (1, TD, H, W*Cout)      output block (lane-dense, 128 lanes)
      xh_ref : (TD+2, H, W*Cin)        VMEM depth-halo input scratch (f32)
      p1_ref : (TD+2, H+2, W*P)        VMEM conv1 output scratch, H-padded (bf16)
      sem    : (3,)                    DMA semaphores (left halo, center, right halo)
    """
    n = pl.program_id(0)
    t = pl.program_id(1)
    num_t = pl.num_programs(1)

    TDp2, H, WCin = xh_ref.shape
    TD = TDp2 - 2
    WP = p1_ref.shape[2]
    WCout = o_ref.shape[3]
    cdt = w1_ref.dtype                      # MXU compute dtype (bf16)

    d0 = t * TD                             # first central output depth

    # ---- start all halo DMAs up front ---------------------------------------
    center = pltpu.make_async_copy(x_hbm.at[n, pl.ds(d0, TD)],
                                   xh_ref.at[pl.ds(1, TD)], sem.at[1])
    center.start()

    @pl.when(t > 0)
    def _():
        pltpu.make_async_copy(x_hbm.at[n, d0 - 1], xh_ref.at[0], sem.at[0]).start()

    @pl.when(t < num_t - 1)
    def _():
        pltpu.make_async_copy(x_hbm.at[n, d0 + TD], xh_ref.at[TD + 1],
                              sem.at[2]).start()

    # ---- zero ONLY the padding the conv2 taps actually read -----------------
    # (a) the H-pad rows 0 and H+1 of every slab (never written by conv1),
    zr = jnp.zeros((TDp2, 1, WP), p1_ref.dtype)
    p1_ref[:, 0:1, :] = zr
    p1_ref[:, H + 1:H + 2, :] = zr
    # (b) the out-of-range depth slab: conv2's depth padding is zero padding of
    #     the conv1 OUTPUT (relu(bn1(0)) != 0, so zero-padding x would be wrong).
    @pl.when(t == 0)
    def _():
        p1_ref[0:1] = jnp.zeros((1, H + 2, WP), p1_ref.dtype)

    @pl.when(t == num_t - 1)
    def _():
        p1_ref[TD + 1:TD + 2] = jnp.zeros((1, H + 2, WP), p1_ref.dtype)

    # ---- conv1 (1x1x1) + bn1 + relu ------------------------------------------
    w1 = w1_ref[...]
    s1 = s1_ref[...]
    b1 = b1_ref[...]

    def conv1(x2d):                          # (M, W*Cin) f32 -> (M, W*P) bf16
        y = jnp.dot(x2d.astype(cdt), w1, preferred_element_type=jnp.float32)
        return jnp.maximum(y * s1 + b1, 0.0).astype(p1_ref.dtype)

    # central TD slabs in one big-M matmul; halo DMAs still in flight underneath
    center.wait()
    a1c = conv1(xh_ref[1:TD + 1].reshape(TD * H, WCin))
    p1_ref[1:TD + 1, 1:H + 1, :] = a1c.reshape(TD, H, WP)

    # halo slabs: wait immediately before use so their latency hides under the
    # central conv1 above
    @pl.when(t > 0)
    def _():
        pltpu.make_async_copy(x_hbm.at[n, d0 - 1], xh_ref.at[0], sem.at[0]).wait()
        p1_ref[0, 1:H + 1, :] = conv1(xh_ref[0])

    @pl.when(t < num_t - 1)
    def _():
        pltpu.make_async_copy(x_hbm.at[n, d0 + TD], xh_ref.at[TD + 1],
                              sem.at[2]).wait()
        p1_ref[TD + 1, 1:H + 1, :] = conv1(xh_ref[TD + 1])

    # ---- conv2 (3x3x3, pad=1) + bn2 + relu -----------------------------------
    # w-taps are absorbed into the block-banded weight; kd is accumulated over
    # 3 matmuls of K = 3*W*P (no (M, 27P) patch matrix materialised).
    w2 = w2_ref[...]
    acc = jnp.zeros((TD * H, WP), jnp.float32)
    for kd in range(3):
        lhs = jnp.concatenate(
            [p1_ref[kd:kd + TD, kh:kh + H, :].reshape(TD * H, WP)
             for kh in range(3)], axis=1)                        # (TD*H, 3*W*P)
        acc = acc + jnp.dot(lhs, w2[kd], preferred_element_type=jnp.float32)
    a2 = jnp.maximum(acc * s2_ref[...] + b2_ref[...], 0.0).astype(cdt)

    # ---- conv3 (1x1x1) + bn3 + residual + relu -------------------------------
    y3 = jnp.dot(a2, w3_ref[...], preferred_element_type=jnp.float32)
    res = xh_ref[1:TD + 1].reshape(TD * H, WCin)     # residual, f32 (Cin == Cout)
    out = jnp.maximum(y3 * s3_ref[...] + b3_ref[...] + res, 0.0)
    o_ref[...] = out.reshape(1, TD, H, WCout).astype(o_ref.dtype)


# ----------------------------------------------------------------------------
# Host wrapper: NCDHW in / NCDHW out, lane-folded layout, banded weights.
# ----------------------------------------------------------------------------

def fold_bn(gamma, beta, mean, var, eps=1e-5):
    scale = gamma / jnp.sqrt(var + eps)
    bias = beta - mean * scale
    return scale.astype(jnp.float32), bias.astype(jnp.float32)


def bottleneck_forward(x_ncdhw, params, stride=1, td=4,
                       compute_dtype=jnp.bfloat16):
    """Bottleneck forward (expansion=2, downsample=None, eval-mode BN)."""
    assert stride == 1, "stride=1 / downsample=None (module defaults) only"

    N, cin, D, H, W = x_ncdhw.shape
    w1, (s1, b1) = params["w1"], params["bn1"]
    w2, (s2, b2) = params["w2"], params["bn2"]
    w3, (s3, b3) = params["w3"], params["bn3"]
    planes = w1.shape[1]
    cout = w3.shape[1]
    assert cin == cout, "residual add requires inplanes == planes * expansion"
    assert D % td == 0, "depth tile must divide D"  # TODO(synk): ragged last tile
    num_t = D // td

    # ---- lane-dense HBM layout: fold (W, C) into the last (lane) dim --------
    x_f = jnp.transpose(x_ncdhw, (0, 2, 3, 4, 1)).reshape(N, D, H, W * cin)

    # ---- block-diagonal / block-banded weights over the folded W axis -------
    eyeW = jnp.eye(W, dtype=jnp.float32)

    def blockdiag(w):                         # (Ci, Co) -> (W*Ci, W*Co)
        return jnp.einsum('wv,io->wivo', eyeW, w).reshape(
            W * w.shape[0], W * w.shape[1])

    w1bd = blockdiag(w1).astype(compute_dtype)               # (W*Cin, W*P)
    w3bd = blockdiag(w3).astype(compute_dtype)               # (W*P, W*Cout)

    def band(kd, kh):                         # block-tridiagonal in w
        out = jnp.zeros((W, planes, W, planes), jnp.float32)
        for kw in range(3):
            # input w_in contributes to output w_out = w_in - (kw - 1)
            e = jnp.eye(W, k=1 - kw, dtype=jnp.float32)
            out = out + jnp.einsum('wv,io->wivo', e, w2[kd, kh, kw])
        return out.reshape(W * planes, W * planes)

    w2band = jnp.stack([
        jnp.concatenate([band(kd, kh) for kh in range(3)], axis=0)
        for kd in range(3)]).astype(compute_dtype)           # (3, 3*W*P, W*P)

    # ---- BN scale / bias tiled over W; applied in f32 epilogue in-kernel ----
    tile = lambda v: jnp.tile(v.astype(jnp.float32), W).reshape(1, -1)
    s1t, b1t = tile(s1), tile(b1)
    s2t, b2t = tile(s2), tile(b2)
    s3t, b3t = tile(s3), tile(b3)

    const2 = lambda n, t: (0, 0)

    out_f = pl.pallas_call(
        _bottleneck_fused_kernel,
        out_shape=jax.ShapeDtypeStruct((N, D, H, W * cout), x_f.dtype),
        grid=(N, num_t),
        in_specs=[
            pl.BlockSpec(memory_space=pl.ANY),        # x in HBM, manual halo DMA
            pl.BlockSpec(w1bd.shape, const2),          # weights: constant index
            pl.BlockSpec(w2band.shape, lambda n, t: (0, 0, 0)),  # -> VMEM-resident
            pl.BlockSpec(w3bd.shape, const2),
            pl.BlockSpec(s1t.shape, const2),
            pl.BlockSpec(b1t.shape, const2),
            pl.BlockSpec(s2t.shape, const2),
            pl.BlockSpec(b2t.shape, const2),
            pl.BlockSpec(s3t.shape, const2),
            pl.BlockSpec(b3t.shape, const2),
        ],
        out_specs=pl.BlockSpec((1, td, H, W * cout), lambda n, t: (n, t, 0, 0)),
        scratch_shapes=[
            pltpu.VMEM((td + 2, H, W * cin), x_f.dtype),            # input halo
            pltpu.VMEM((td + 2, H + 2, W * planes), compute_dtype),  # conv1 out
            pltpu.SemaphoreType.DMA((3,)),
        ],
        compiler_params=pltpu.CompilerParams(
            # stateless grid steps -> both axes megacore-splittable (v7x 2 TCs)
            dimension_semantics=("parallel", "parallel"),
            vmem_limit_bytes=32 * 1024 * 1024),
    )(x_f, w1bd, w2band, w3bd, s1t, b1t, s2t, b2t, s3t, b3t)

    out = out_f.reshape(N, D, H, W, cout)
    return jnp.transpose(out, (0, 4, 1, 2, 3))               # NDHWC -> NCDHW


# ----------------------------------------------------------------------------
# Pure-JAX reference (NCDHW, eval-mode BN) for a sanity check
# ----------------------------------------------------------------------------

def bottleneck_ref(x, params, stride=1):
    w1, (s1, b1) = params["w1"], params["bn1"]
    w2, (s2, b2) = params["w2"], params["bn2"]
    w3, (s3, b3) = params["w3"], params["bn3"]

    def bn(y, s, b):
        return y * s.reshape(1, -1, 1, 1, 1) + b.reshape(1, -1, 1, 1, 1)

    y = jnp.einsum("ncdhw,co->nodhw", x, w1, precision=lax.Precision.HIGHEST)
    y = jnp.maximum(bn(y, s1, b1), 0.0)

    w2_oidhw = jnp.transpose(w2, (4, 3, 0, 1, 2))
    y = lax.conv_general_dilated(
        y, w2_oidhw, (stride,) * 3, [(1, 1)] * 3,
        dimension_numbers=("NCDHW", "OIDHW", "NCDHW"),
        precision=lax.Precision.HIGHEST)
    y = jnp.maximum(bn(y, s2, b2), 0.0)

    y = jnp.einsum("ncdhw,co->nodhw", y, w3, precision=lax.Precision.HIGHEST)
    y = bn(y, s3, b3) + x
    return jnp.maximum(y, 0.0)


# ----------------------------------------------------------------------------
# main
# ----------------------------------------------------------------------------

if __name__ == "__main__":
    # Bottleneck(inplanes=8, planes=4) -> expansion 2 -> out channels 8.
    # W * inplanes = 16 * 8 = 128 -> exactly one lane-dense vreg row.
    inplanes, planes, expansion, stride = 8, 4, 2, 1
    N, D, H, W = 2, 8, 16, 16

    key = jax.random.PRNGKey(0)
    ks = jax.random.split(key, 12)

    w1 = jax.random.normal(ks[0], (inplanes, planes), jnp.float32) * 0.1
    w2 = jax.random.normal(ks[1], (3, 3, 3, planes, planes), jnp.float32) * 0.1
    w3 = jax.random.normal(ks[2], (planes, planes * expansion), jnp.float32) * 0.1

    def make_bn(k, c):
        k1, k2, k3, k4 = jax.random.split(k, 4)
        gamma = 1.0 + 0.2 * jax.random.normal(k1, (c,), jnp.float32)
        beta = 0.1 * jax.random.normal(k2, (c,), jnp.float32)
        mean = 0.1 * jax.random.normal(k3, (c,), jnp.float32)
        var = 0.5 + jax.random.uniform(k4, (c,), jnp.float32)
        return fold_bn(gamma, beta, mean, var)

    params = {
        "w1": w1, "bn1": make_bn(ks[3], planes),
        "w2": w2, "bn2": make_bn(ks[4], planes),
        "w3": w3, "bn3": make_bn(ks[5], planes * expansion),
    }

    x = jax.random.normal(ks[10], (N, inplanes, D, H, W), jnp.float32)

    # td=4 -> grid (N, 2): exercises both the missing-left-halo and
    # missing-right-halo paths as well as the depth-tiled bulk path.
    out = jax.block_until_ready(bottleneck_forward(x, params, stride=stride, td=4))
    ref = jax.block_until_ready(bottleneck_ref(x, params, stride=stride))

    assert out.shape == ref.shape == (N, inplanes, D, H, W)
    max_diff = float(jnp.max(jnp.abs(out - ref)))
    # bf16 MXU inputs with f32 accumulation; BN scale/bias + residual in f32.
    assert np.allclose(np.asarray(out), np.asarray(ref), rtol=2e-2, atol=2e-2), (
        "max abs diff %g" % max_diff)

    print("KERNEL_OK")
</pallas_src>

<mosaic_0001>
module attributes {stable_mosaic.version = 11 : i64} {
  func.func @_bottleneck_fused_kernel(%arg0: i32, %arg1: i32, %arg2: memref<2x8x16x128xf32, #tpu.memory_space<any>>, %arg3: memref<128x64xbf16, #tpu.memory_space<vmem>>, %arg4: memref<3x192x64xbf16, #tpu.memory_space<vmem>>, %arg5: memref<64x128xbf16, #tpu.memory_space<vmem>>, %arg6: memref<1x64xf32, #tpu.memory_space<vmem>>, %arg7: memref<1x64xf32, #tpu.memory_space<vmem>>, %arg8: memref<1x64xf32, #tpu.memory_space<vmem>>, %arg9: memref<1x64xf32, #tpu.memory_space<vmem>>, %arg10: memref<1x128xf32, #tpu.memory_space<vmem>>, %arg11: memref<1x128xf32, #tpu.memory_space<vmem>>, %arg12: memref<1x4x16x128xf32, #tpu.memory_space<vmem>>, %arg13: memref<6x16x128xf32, #tpu.memory_space<vmem>>, %arg14: memref<6x18x64xbf16, #tpu.memory_space<vmem>>, %arg15: memref<3x!tpu.dma_semaphore, #tpu.memory_space<semaphore_mem>>) attributes {dimension_semantics = [#tpu.dimension_semantics<parallel>, #tpu.dimension_semantics<parallel>], iteration_bounds = array<i64: 2, 2>, scalar_prefetch = 0 : i64, scratch_operands = 3 : i64, tpu.core_type = #tpu.core_type<tc>, window_params = [{}, {pipeline_mode = #tpu.pipeline_mode<synchronous>, transform_indices = @transform_1, window_bounds = array<i64: 128, 64>}, {pipeline_mode = #tpu.pipeline_mode<synchronous>, transform_indices = @transform_2, window_bounds = array<i64: 3, 192, 64>}, {pipeline_mode = #tpu.pipeline_mode<synchronous>, transform_indices = @transform_3, window_bounds = array<i64: 64, 128>}, {pipeline_mode = #tpu.pipeline_mode<synchronous>, transform_indices = @transform_4, window_bounds = array<i64: 1, 64>}, {pipeline_mode = #tpu.pipeline_mode<synchronous>, transform_indices = @transform_5, window_bounds = array<i64: 1, 64>}, {pipeline_mode = #tpu.pipeline_mode<synchronous>, transform_indices = @transform_6, window_bounds = array<i64: 1, 64>}, {pipeline_mode = #tpu.pipeline_mode<synchronous>, transform_indices = @transform_7, window_bounds = array<i64: 1, 64>}, {pipeline_mode = #tpu.pipeline_mode<synchronous>, transform_indices = @transform_8, window_bounds = array<i64: 1, 128>}, {pipeline_mode = #tpu.pipeline_mode<synchronous>, transform_indices = @transform_9, window_bounds = array<i64: 1, 128>}, {transform_indices = @transform_10, window_bounds = array<i64: 1, 4, 16, 128>}]} {
    %c4_i32 = arith.constant 4 : i32
    %0 = arith.muli %arg1, %c4_i32 : i32
    %c1_i32 = arith.constant 1 : i32
    %c0_i32 = arith.constant 0 : i32
    %c0_i32_0 = arith.constant 0 : i32
    %1 = tpu.memref_slice %arg2[%arg0, %0, %c0_i32, %c0_i32_0] : memref<2x8x16x128xf32, #tpu.memory_space<any>> -> memref<1x4x16x128xf32, #tpu.memory_space<any>>
    %2 = tpu.memref_squeeze %1 : memref<1x4x16x128xf32, #tpu.memory_space<any>> -> memref<4x16x128xf32, #tpu.memory_space<any>>
    %c1_i32_1 = arith.constant 1 : i32
    %c0_i32_2 = arith.constant 0 : i32
    %c0_i32_3 = arith.constant 0 : i32
    %3 = tpu.memref_slice %arg13[%c1_i32_1, %c0_i32_2, %c0_i32_3] : memref<6x16x128xf32, #tpu.memory_space<vmem>> -> memref<4x16x128xf32, #tpu.memory_space<vmem>>
    %4 = tpu.memref_slice %arg15[%c1_i32] : memref<3x!tpu.dma_semaphore, #tpu.memory_space<semaphore_mem>> -> memref<1x!tpu.dma_semaphore, #tpu.memory_space<semaphore_mem>>
    %5 = tpu.memref_squeeze %4 : memref<1x!tpu.dma_semaphore, #tpu.memory_space<semaphore_mem>> -> memref<!tpu.dma_semaphore, #tpu.memory_space<semaphore_mem>>
    tpu.enqueue_dma source(%2 : memref<4x16x128xf32, #tpu.memory_space<any>>) target(%3 : memref<4x16x128xf32, #tpu.memory_space<vmem>>) target_semaphore(%5 : memref<!tpu.dma_semaphore, #tpu.memory_space<semaphore_mem>>)
    %c0_i32_4 = arith.constant 0 : i32
    %6 = arith.cmpi sgt, %arg1, %c0_i32_4 : i32
    %7 = arith.extui %6 : i1 to i32
    %c0_i32_5 = arith.constant 0 : i32
    %8 = arith.cmpi ne, %7, %c0_i32_5 : i32
    scf.if %8 {
      %c1_i32_92 = arith.constant 1 : i32
      %107 = arith.subi %0, %c1_i32_92 : i32
      %c0_i32_93 = arith.constant 0 : i32
      %c0_i32_94 = arith.constant 0 : i32
      %c0_i32_95 = arith.constant 0 : i32
      %c0_i32_96 = arith.constant 0 : i32
      %108 = tpu.memref_slice %arg2[%arg0, %107, %c0_i32_95, %c0_i32_96] : memref<2x8x16x128xf32, #tpu.memory_space<any>> -> memref<1x1x16x128xf32, #tpu.memory_space<any>>
      %109 = tpu.memref_squeeze %108 : memref<1x1x16x128xf32, #tpu.memory_space<any>> -> memref<16x128xf32, #tpu.memory_space<any>>
      %c0_i32_97 = arith.constant 0 : i32
      %c0_i32_98 = arith.constant 0 : i32
      %110 = tpu.memref_slice %arg13[%c0_i32_93, %c0_i32_97, %c0_i32_98] : memref<6x16x128xf32, #tpu.memory_space<vmem>> -> memref<1x16x128xf32, #tpu.memory_space<vmem>>
      %111 = tpu.memref_squeeze %110 : memref<1x16x128xf32, #tpu.memory_space<vmem>> -> memref<16x128xf32, #tpu.memory_space<vmem>>
      %112 = tpu.memref_slice %arg15[%c0_i32_94] : memref<3x!tpu.dma_semaphore, #tpu.memory_space<semaphore_mem>> -> memref<1x!tpu.dma_semaphore, #tpu.memory_space<semaphore_mem>>
      %113 = tpu.memref_squeeze %112 : memref<1x!tpu.dma_semaphore, #tpu.memory_space<semaphore_mem>> -> memref<!tpu.dma_semaphore, #tpu.memory_space<semaphore_mem>>
      tpu.enqueue_dma source(%109 : memref<16x128xf32, #tpu.memory_space<any>>) target(%111 : memref<16x128xf32, #tpu.memory_space<vmem>>) target_semaphore(%113 : memref<!tpu.dma_semaphore, #tpu.memory_space<semaphore_mem>>)
    } else {
    }
    %c1_i32_6 = arith.constant 1 : i32
    %9 = arith.cmpi slt, %arg1, %c1_i32_6 : i32
    %10 = arith.extui %9 : i1 to i32
    %c0_i32_7 = arith.constant 0 : i32
    %11 = arith.cmpi ne, %10, %c0_i32_7 : i32
    scf.if %11 {
      %c4_i32_92 = arith.constant 4 : i32
      %107 = arith.addi %0, %c4_i32_92 : i32
      %c5_i32 = arith.constant 5 : i32
      %c2_i32 = arith.constant 2 : i32
      %c0_i32_93 = arith.constant 0 : i32
      %c0_i32_94 = arith.constant 0 : i32
      %108 = tpu.memref_slice %arg2[%arg0, %107, %c0_i32_93, %c0_i32_94] : memref<2x8x16x128xf32, #tpu.memory_space<any>> -> memref<1x1x16x128xf32, #tpu.memory_space<any>>
      %109 = tpu.memref_squeeze %108 : memref<1x1x16x128xf32, #tpu.memory_space<any>> -> memref<16x128xf32, #tpu.memory_space<any>>
      %c0_i32_95 = arith.constant 0 : i32
      %c0_i32_96 = arith.constant 0 : i32
      %110 = tpu.memref_slice %arg13[%c5_i32, %c0_i32_95, %c0_i32_96] : memref<6x16x128xf32, #tpu.memory_space<vmem>> -> memref<1x16x128xf32, #tpu.memory_space<vmem>>
      %111 = tpu.memref_squeeze %110 : memref<1x16x128xf32, #tpu.memory_space<vmem>> -> memref<16x128xf32, #tpu.memory_space<vmem>>
      %112 = tpu.memref_slice %arg15[%c2_i32] : memref<3x!tpu.dma_semaphore, #tpu.memory_space<semaphore_mem>> -> memref<1x!tpu.dma_semaphore, #tpu.memory_space<semaphore_mem>>
      %113 = tpu.memref_squeeze %112 : memref<1x!tpu.dma_semaphore, #tpu.memory_space<semaphore_mem>> -> memref<!tpu.dma_semaphore, #tpu.memory_space<semaphore_mem>>
      tpu.enqueue_dma source(%109 : memref<16x128xf32, #tpu.memory_space<any>>) target(%111 : memref<16x128xf32, #tpu.memory_space<vmem>>) target_semaphore(%113 : memref<!tpu.dma_semaphore, #tpu.memory_space<semaphore_mem>>)
    } else {
    }
    %cst = arith.constant 0.000000e+00 : bf16
    %12 = vector.broadcast %cst : bf16 to vector<6x1x64xbf16>
    %c0 = arith.constant 0 : index
    %c0_8 = arith.constant 0 : index
    %c0_9 = arith.constant 0 : index
    %13 = vector.load %arg14[%c0, %c0_8, %c0_9] : memref<6x18x64xbf16, #tpu.memory_space<vmem>>, vector<6x1x64xbf16>
    tpu.vector_store %arg14[%c0, %c0_8, %c0_9], %12 {strides = array<i32>} : memref<6x18x64xbf16, #tpu.memory_space<vmem>>, vector<6x1x64xbf16>,
    %c0_10 = arith.constant 0 : index
    %c17 = arith.constant 17 : index
    %c0_11 = arith.constant 0 : index
    %14 = vector.load %arg14[%c0_10, %c17, %c0_11] : memref<6x18x64xbf16, #tpu.memory_space<vmem>>, vector<6x1x64xbf16>
    tpu.vector_store %arg14[%c0_10, %c17, %c0_11], %12 {strides = array<i32>} : memref<6x18x64xbf16, #tpu.memory_space<vmem>>, vector<6x1x64xbf16>,
    %c0_i32_12 = arith.constant 0 : i32
    %15 = arith.cmpi eq, %arg1, %c0_i32_12 : i32
    %16 = arith.extui %15 : i1 to i32
    %c0_i32_13 = arith.constant 0 : i32
    %17 = arith.cmpi ne, %16, %c0_i32_13 : i32
    scf.if %17 {
      %cst_92 = arith.constant 0.000000e+00 : bf16
      %107 = vector.broadcast %cst_92 : bf16 to vector<1x18x64xbf16>
      %c0_93 = arith.constant 0 : index
      %c0_94 = arith.constant 0 : index
      %c0_95 = arith.constant 0 : index
      %108 = vector.load %arg14[%c0_93, %c0_94, %c0_95] : memref<6x18x64xbf16, #tpu.memory_space<vmem>>, vector<1x18x64xbf16>
      tpu.vector_store %arg14[%c0_93, %c0_94, %c0_95], %107 {strides = array<i32>} : memref<6x18x64xbf16, #tpu.memory_space<vmem>>, vector<1x18x64xbf16>,
    } else {
    }
    %c1_i32_14 = arith.constant 1 : i32
    %18 = arith.cmpi eq, %arg1, %c1_i32_14 : i32
    %19 = arith.extui %18 : i1 to i32
    %c0_i32_15 = arith.constant 0 : i32
    %20 = arith.cmpi ne, %19, %c0_i32_15 : i32
    scf.if %20 {
      %cst_92 = arith.constant 0.000000e+00 : bf16
      %107 = vector.broadcast %cst_92 : bf16 to vector<1x18x64xbf16>
      %c5 = arith.constant 5 : index
      %c0_93 = arith.constant 0 : index
      %c0_94 = arith.constant 0 : index
      %108 = vector.load %arg14[%c5, %c0_93, %c0_94] : memref<6x18x64xbf16, #tpu.memory_space<vmem>>, vector<1x18x64xbf16>
      tpu.vector_store %arg14[%c5, %c0_93, %c0_94], %107 {strides = array<i32>} : memref<6x18x64xbf16, #tpu.memory_space<vmem>>, vector<1x18x64xbf16>,
    } else {
    }
    %c0_16 = arith.constant 0 : index
    %c0_17 = arith.constant 0 : index
    %21 = vector.load %arg3[%c0_16, %c0_17] : memref<128x64xbf16, #tpu.memory_space<vmem>>, vector<128x64xbf16>
    %c0_18 = arith.constant 0 : index
    %c0_19 = arith.constant 0 : index
    %22 = vector.load %arg6[%c0_18, %c0_19] : memref<1x64xf32, #tpu.memory_space<vmem>>, vector<1x64xf32>
    %c0_20 = arith.constant 0 : index
    %c0_21 = arith.constant 0 : index
    %23 = vector.load %arg7[%c0_20, %c0_21] : memref<1x64xf32, #tpu.memory_space<vmem>>, vector<1x64xf32>
    %c1_i32_22 = arith.constant 1 : i32
    %c0_i32_23 = arith.constant 0 : i32
    %c0_i32_24 = arith.constant 0 : i32
    %24 = tpu.memref_slice %arg2[%arg0, %0, %c0_i32_23, %c0_i32_24] : memref<2x8x16x128xf32, #tpu.memory_space<any>> -> memref<1x4x16x128xf32, #tpu.memory_space<any>>
    %25 = tpu.memref_squeeze %24 : memref<1x4x16x128xf32, #tpu.memory_space<any>> -> memref<4x16x128xf32, #tpu.memory_space<any>>
    %c1_i32_25 = arith.constant 1 : i32
    %c0_i32_26 = arith.constant 0 : i32
    %c0_i32_27 = arith.constant 0 : i32
    %26 = tpu.memref_slice %arg13[%c1_i32_25, %c0_i32_26, %c0_i32_27] : memref<6x16x128xf32, #tpu.memory_space<vmem>> -> memref<4x16x128xf32, #tpu.memory_space<vmem>>
    %27 = tpu.memref_slice %arg15[%c1_i32_22] : memref<3x!tpu.dma_semaphore, #tpu.memory_space<semaphore_mem>> -> memref<1x!tpu.dma_semaphore, #tpu.memory_space<semaphore_mem>>
    %28 = tpu.memref_squeeze %27 : memref<1x!tpu.dma_semaphore, #tpu.memory_space<semaphore_mem>> -> memref<!tpu.dma_semaphore, #tpu.memory_space<semaphore_mem>>
    tpu.wait_dma2 semaphore(%28 : memref<!tpu.dma_semaphore, #tpu.memory_space<semaphore_mem>>) src(%25 : memref<4x16x128xf32, #tpu.memory_space<any>>) dst(%26 : memref<4x16x128xf32, #tpu.memory_space<vmem>>)
    %c1 = arith.constant 1 : index
    %c0_28 = arith.constant 0 : index
    %c0_29 = arith.constant 0 : index
    %29 = vector.load %arg13[%c1, %c0_28, %c0_29] : memref<6x16x128xf32, #tpu.memory_space<vmem>>, vector<4x16x128xf32>
    %30 = vector.shape_cast %29 : vector<4x16x128xf32> to vector<64x128xf32>
    %31 = arith.truncf %30 : vector<64x128xf32> to vector<64x128xbf16>
    %cst_30 = arith.constant dense<0.000000e+00> : vector<64x64xf32>
    %32 = tpu.matmul %31, %21, %cst_30 {dimension_numbers = #tpu.dot_dimension_numbers<[1], [0], [0], [1], [0, 0, 1, 1], [], []>} : vector<64x128xbf16>, vector<128x64xbf16>, vector<64x64xf32> -> vector<64x64xf32>
    %33 = vector.broadcast %22 : vector<1x64xf32> to vector<64x64xf32>
    %34 = arith.mulf %32, %33 : vector<64x64xf32>
    %35 = vector.broadcast %23 : vector<1x64xf32> to vector<64x64xf32>
    %36 = arith.addf %34, %35 : vector<64x64xf32>
    %cst_31 = arith.constant 0.000000e+00 : f32
    %37 = vector.broadcast %cst_31 : f32 to vector<64x64xf32>
    %38 = arith.maximumf %36, %37 : vector<64x64xf32>
    %39 = arith.truncf %38 : vector<64x64xf32> to vector<64x64xbf16>
    %40 = vector.shape_cast %39 : vector<64x64xbf16> to vector<4x16x64xbf16>
    %c1_32 = arith.constant 1 : index
    %c1_33 = arith.constant 1 : index
    %c0_34 = arith.constant 0 : index
    %41 = vector.load %arg14[%c1_32, %c1_33, %c0_34] : memref<6x18x64xbf16, #tpu.memory_space<vmem>>, vector<4x16x64xbf16>
    tpu.vector_store %arg14[%c1_32, %c1_33, %c0_34], %40 {strides = array<i32>} : memref<6x18x64xbf16, #tpu.memory_space<vmem>>, vector<4x16x64xbf16>,
    %c0_i32_35 = arith.constant 0 : i32
    %42 = arith.cmpi sgt, %arg1, %c0_i32_35 : i32
    %43 = arith.extui %42 : i1 to i32
    %c0_i32_36 = arith.constant 0 : i32
    %44 = arith.cmpi ne, %43, %c0_i32_36 : i32
    scf.if %44 {
      %c1_i32_92 = arith.constant 1 : i32
      %107 = arith.subi %0, %c1_i32_92 : i32
      %c0_i32_93 = arith.constant 0 : i32
      %c0_i32_94 = arith.constant 0 : i32
      %c0_i32_95 = arith.constant 0 : i32
      %c0_i32_96 = arith.constant 0 : i32
      %108 = tpu.memref_slice %arg2[%arg0, %107, %c0_i32_95, %c0_i32_96] : memref<2x8x16x128xf32, #tpu.memory_space<any>> -> memref<1x1x16x128xf32, #tpu.memory_space<any>>
      %109 = tpu.memref_squeeze %108 : memref<1x1x16x128xf32, #tpu.memory_space<any>> -> memref<16x128xf32, #tpu.memory_space<any>>
      %c0_i32_97 = arith.constant 0 : i32
      %c0_i32_98 = arith.constant 0 : i32
      %110 = tpu.memref_slice %arg13[%c0_i32_93, %c0_i32_97, %c0_i32_98] : memref<6x16x128xf32, #tpu.memory_space<vmem>> -> memref<1x16x128xf32, #tpu.memory_space<vmem>>
      %111 = tpu.memref_squeeze %110 : memref<1x16x128xf32, #tpu.memory_space<vmem>> -> memref<16x128xf32, #tpu.memory_space<vmem>>
      %112 = tpu.memref_slice %arg15[%c0_i32_94] : memref<3x!tpu.dma_semaphore, #tpu.memory_space<semaphore_mem>> -> memref<1x!tpu.dma_semaphore, #tpu.memory_space<semaphore_mem>>
      %113 = tpu.memref_squeeze %112 : memref<1x!tpu.dma_semaphore, #tpu.memory_space<semaphore_mem>> -> memref<!tpu.dma_semaphore, #tpu.memory_space<semaphore_mem>>
      tpu.wait_dma2 semaphore(%113 : memref<!tpu.dma_semaphore, #tpu.memory_space<semaphore_mem>>) src(%109 : memref<16x128xf32, #tpu.memory_space<any>>) dst(%111 : memref<16x128xf32, #tpu.memory_space<vmem>>)
      %c0_99 = arith.constant 0 : index
      %c0_100 = arith.constant 0 : index
      %c0_101 = arith.constant 0 : index
      %114 = vector.load %arg13[%c0_99, %c0_100, %c0_101] : memref<6x16x128xf32, #tpu.memory_space<vmem>>, vector<1x16x128xf32>
      %115 = vector.shape_cast %114 : vector<1x16x128xf32> to vector<16x128xf32>
      %116 = arith.truncf %115 : vector<16x128xf32> to vector<16x128xbf16>
      %cst_102 = arith.constant dense<0.000000e+00> : vector<16x64xf32>
      %117 = tpu.matmul %116, %21, %cst_102 {dimension_numbers = #tpu.dot_dimension_numbers<[1], [0], [0], [1], [0, 0, 1, 1], [], []>} : vector<16x128xbf16>, vector<128x64xbf16>, vector<16x64xf32> -> vector<16x64xf32>
      %118 = vector.broadcast %22 : vector<1x64xf32> to vector<16x64xf32>
      %119 = arith.mulf %117, %118 : vector<16x64xf32>
      %120 = vector.broadcast %23 : vector<1x64xf32> to vector<16x64xf32>
      %121 = arith.addf %119, %120 : vector<16x64xf32>
      %cst_103 = arith.constant 0.000000e+00 : f32
      %122 = vector.broadcast %cst_103 : f32 to vector<16x64xf32>
      %123 = arith.maximumf %121, %122 : vector<16x64xf32>
      %124 = arith.truncf %123 : vector<16x64xf32> to vector<16x64xbf16>
      %c0_104 = arith.constant 0 : index
      %c1_105 = arith.constant 1 : index
      %c0_106 = arith.constant 0 : index
      %125 = vector.load %arg14[%c0_104, %c1_105, %c0_106] : memref<6x18x64xbf16, #tpu.memory_space<vmem>>, vector<1x16x64xbf16>
      %126 = vector.shape_cast %125 : vector<1x16x64xbf16> to vector<16x64xbf16>
      %127 = vector.shape_cast %124 : vector<16x64xbf16> to vector<1x16x64xbf16>
      tpu.vector_store %arg14[%c0_104, %c1_105, %c0_106], %127 {strides = array<i32>} : memref<6x18x64xbf16, #tpu.memory_space<vmem>>, vector<1x16x64xbf16>,
    } else {
    }
    %c1_i32_37 = arith.constant 1 : i32
    %45 = arith.cmpi slt, %arg1, %c1_i32_37 : i32
    %46 = arith.extui %45 : i1 to i32
    %c0_i32_38 = arith.constant 0 : i32
    %47 = arith.cmpi ne, %46, %c0_i32_38 : i32
    scf.if %47 {
      %c4_i32_92 = arith.constant 4 : i32
      %107 = arith.addi %0, %c4_i32_92 : i32
      %c5_i32 = arith.constant 5 : i32
      %c2_i32 = arith.constant 2 : i32
      %c0_i32_93 = arith.constant 0 : i32
      %c0_i32_94 = arith.constant 0 : i32
      %108 = tpu.memref_slice %arg2[%arg0, %107, %c0_i32_93, %c0_i32_94] : memref<2x8x16x128xf32, #tpu.memory_space<any>> -> memref<1x1x16x128xf32, #tpu.memory_space<any>>
      %109 = tpu.memref_squeeze %108 : memref<1x1x16x128xf32, #tpu.memory_space<any>> -> memref<16x128xf32, #tpu.memory_space<any>>
      %c0_i32_95 = arith.constant 0 : i32
      %c0_i32_96 = arith.constant 0 : i32
      %110 = tpu.memref_slice %arg13[%c5_i32, %c0_i32_95, %c0_i32_96] : memref<6x16x128xf32, #tpu.memory_space<vmem>> -> memref<1x16x128xf32, #tpu.memory_space<vmem>>
      %111 = tpu.memref_squeeze %110 : memref<1x16x128xf32, #tpu.memory_space<vmem>> -> memref<16x128xf32, #tpu.memory_space<vmem>>
      %112 = tpu.memref_slice %arg15[%c2_i32] : memref<3x!tpu.dma_semaphore, #tpu.memory_space<semaphore_mem>> -> memref<1x!tpu.dma_semaphore, #tpu.memory_space<semaphore_mem>>
      %113 = tpu.memref_squeeze %112 : memref<1x!tpu.dma_semaphore, #tpu.memory_space<semaphore_mem>> -> memref<!tpu.dma_semaphore, #tpu.memory_space<semaphore_mem>>
      tpu.wait_dma2 semaphore(%113 : memref<!tpu.dma_semaphore, #tpu.memory_space<semaphore_mem>>) src(%109 : memref<16x128xf32, #tpu.memory_space<any>>) dst(%111 : memref<16x128xf32, #tpu.memory_space<vmem>>)
      %c5 = arith.constant 5 : index
      %c0_97 = arith.constant 0 : index
      %c0_98 = arith.constant 0 : index
      %114 = vector.load %arg13[%c5, %c0_97, %c0_98] : memref<6x16x128xf32, #tpu.memory_space<vmem>>, vector<1x16x128xf32>
      %115 = vector.shape_cast %114 : vector<1x16x128xf32> to vector<16x128xf32>
      %116 = arith.truncf %115 : vector<16x128xf32> to vector<16x128xbf16>
      %cst_99 = arith.constant dense<0.000000e+00> : vector<16x64xf32>
      %117 = tpu.matmul %116, %21, %cst_99 {dimension_numbers = #tpu.dot_dimension_numbers<[1], [0], [0], [1], [0, 0, 1, 1], [], []>} : vector<16x128xbf16>, vector<128x64xbf16>, vector<16x64xf32> -> vector<16x64xf32>
      %118 = vector.broadcast %22 : vector<1x64xf32> to vector<16x64xf32>
      %119 = arith.mulf %117, %118 : vector<16x64xf32>
      %120 = vector.broadcast %23 : vector<1x64xf32> to vector<16x64xf32>
      %121 = arith.addf %119, %120 : vector<16x64xf32>
      %cst_100 = arith.constant 0.000000e+00 : f32
      %122 = vector.broadcast %cst_100 : f32 to vector<16x64xf32>
      %123 = arith.maximumf %121, %122 : vector<16x64xf32>
      %124 = arith.truncf %123 : vector<16x64xf32> to vector<16x64xbf16>
      %c5_101 = arith.constant 5 : index
      %c1_102 = arith.constant 1 : index
      %c0_103 = arith.constant 0 : index
      %125 = vector.load %arg14[%c5_101, %c1_102, %c0_103] : memref<6x18x64xbf16, #tpu.memory_space<vmem>>, vector<1x16x64xbf16>
      %126 = vector.shape_cast %125 : vector<1x16x64xbf16> to vector<16x64xbf16>
      %127 = vector.shape_cast %124 : vector<16x64xbf16> to vector<1x16x64xbf16>
      tpu.vector_store %arg14[%c5_101, %c1_102, %c0_103], %127 {strides = array<i32>} : memref<6x18x64xbf16, #tpu.memory_space<vmem>>, vector<1x16x64xbf16>,
    } else {
    }
    %c0_39 = arith.constant 0 : index
    %c0_40 = arith.constant 0 : index
    %c0_41 = arith.constant 0 : index
    %48 = vector.load %arg4[%c0_39, %c0_40, %c0_41] : memref<3x192x64xbf16, #tpu.memory_space<vmem>>, vector<3x192x64xbf16>
    %cst_42 = arith.constant 0.000000e+00 : f32
    %49 = vector.broadcast %cst_42 : f32 to vector<64x64xf32>
    %c0_43 = arith.constant 0 : index
    %c0_44 = arith.constant 0 : index
    %c0_45 = arith.constant 0 : index
    %50 = vector.load %arg14[%c0_43, %c0_44, %c0_45] : memref<6x18x64xbf16, #tpu.memory_space<vmem>>, vector<4x16x64xbf16>
    %51 = vector.shape_cast %50 : vector<4x16x64xbf16> to vector<64x64xbf16>
    %c0_46 = arith.constant 0 : index
    %c1_47 = arith.constant 1 : index
    %c0_48 = arith.constant 0 : index
    %52 = vector.load %arg14[%c0_46, %c1_47, %c0_48] : memref<6x18x64xbf16, #tpu.memory_space<vmem>>, vector<4x16x64xbf16>
    %53 = vector.shape_cast %52 : vector<4x16x64xbf16> to vector<64x64xbf16>
    %c0_49 = arith.constant 0 : index
    %c2 = arith.constant 2 : index
    %c0_50 = arith.constant 0 : index
    %54 = vector.load %arg14[%c0_49, %c2, %c0_50] : memref<6x18x64xbf16, #tpu.memory_space<vmem>>, vector<4x16x64xbf16>
    %55 = vector.shape_cast %54 : vector<4x16x64xbf16> to vector<64x64xbf16>
    %56 = tpu.concatenate %51, %53, %55 in 1 : vector<64x64xbf16>, vector<64x64xbf16>, vector<64x64xbf16> -> vector<64x192xbf16>
    %57 = vector.extract_strided_slice %48 {offsets = [0, 0, 0], sizes = [1, 192, 64], strides = [1, 1, 1]} : vector<3x192x64xbf16> to vector<1x192x64xbf16>
    %58 = vector.shape_cast %57 : vector<1x192x64xbf16> to vector<192x64xbf16>
    %cst_51 = arith.constant dense<0.000000e+00> : vector<64x64xf32>
    %59 = tpu.matmul %56, %58, %cst_51 {dimension_numbers = #tpu.dot_dimension_numbers<[1], [0], [0], [1], [0, 0, 1, 1], [], []>} : vector<64x192xbf16>, vector<192x64xbf16>, vector<64x64xf32> -> vector<64x64xf32>
    %60 = arith.addf %49, %59 : vector<64x64xf32>
    %c1_52 = arith.constant 1 : index
    %c0_53 = arith.constant 0 : index
    %c0_54 = arith.constant 0 : index
    %61 = vector.load %arg14[%c1_52, %c0_53, %c0_54] : memref<6x18x64xbf16, #tpu.memory_space<vmem>>, vector<4x16x64xbf16>
    %62 = vector.shape_cast %61 : vector<4x16x64xbf16> to vector<64x64xbf16>
    %c1_55 = arith.constant 1 : index
    %c1_56 = arith.constant 1 : index
    %c0_57 = arith.constant 0 : index
    %63 = vector.load %arg14[%c1_55, %c1_56, %c0_57] : memref<6x18x64xbf16, #tpu.memory_space<vmem>>, vector<4x16x64xbf16>
    %64 = vector.shape_cast %63 : vector<4x16x64xbf16> to vector<64x64xbf16>
    %c1_58 = arith.constant 1 : index
    %c2_59 = arith.constant 2 : index
    %c0_60 = arith.constant 0 : index
    %65 = vector.load %arg14[%c1_58, %c2_59, %c0_60] : memref<6x18x64xbf16, #tpu.memory_space<vmem>>, vector<4x16x64xbf16>
    %66 = vector.shape_cast %65 : vector<4x16x64xbf16> to vector<64x64xbf16>
    %67 = tpu.concatenate %62, %64, %66 in 1 : vector<64x64xbf16>, vector<64x64xbf16>, vector<64x64xbf16> -> vector<64x192xbf16>
    %68 = vector.extract_strided_slice %48 {offsets = [1, 0, 0], sizes = [1, 192, 64], strides = [1, 1, 1]} : vector<3x192x64xbf16> to vector<1x192x64xbf16>
    %69 = vector.shape_cast %68 : vector<1x192x64xbf16> to vector<192x64xbf16>
    %cst_61 = arith.constant dense<0.000000e+00> : vector<64x64xf32>
    %70 = tpu.matmul %67, %69, %cst_61 {dimension_numbers = #tpu.dot_dimension_numbers<[1], [0], [0], [1], [0, 0, 1, 1], [], []>} : vector<64x192xbf16>, vector<192x64xbf16>, vector<64x64xf32> -> vector<64x64xf32>
    %71 = arith.addf %60, %70 : vector<64x64xf32>
    %c2_62 = arith.constant 2 : index
    %c0_63 = arith.constant 0 : index
    %c0_64 = arith.constant 0 : index
    %72 = vector.load %arg14[%c2_62, %c0_63, %c0_64] : memref<6x18x64xbf16, #tpu.memory_space<vmem>>, vector<4x16x64xbf16>
    %73 = vector.shape_cast %72 : vector<4x16x64xbf16> to vector<64x64xbf16>
    %c2_65 = arith.constant 2 : index
    %c1_66 = arith.constant 1 : index
    %c0_67 = arith.constant 0 : index
    %74 = vector.load %arg14[%c2_65, %c1_66, %c0_67] : memref<6x18x64xbf16, #tpu.memory_space<vmem>>, vector<4x16x64xbf16>
    %75 = vector.shape_cast %74 : vector<4x16x64xbf16> to vector<64x64xbf16>
    %c2_68 = arith.constant 2 : index
    %c2_69 = arith.constant 2 : index
    %c0_70 = arith.constant 0 : index
    %76 = vector.load %arg14[%c2_68, %c2_69, %c0_70] : memref<6x18x64xbf16, #tpu.memory_space<vmem>>, vector<4x16x64xbf16>
    %77 = vector.shape_cast %76 : vector<4x16x64xbf16> to vector<64x64xbf16>
    %78 = tpu.concatenate %73, %75, %77 in 1 : vector<64x64xbf16>, vector<64x64xbf16>, vector<64x64xbf16> -> vector<64x192xbf16>
    %79 = vector.extract_strided_slice %48 {offsets = [2, 0, 0], sizes = [1, 192, 64], strides = [1, 1, 1]} : vector<3x192x64xbf16> to vector<1x192x64xbf16>
    %80 = vector.shape_cast %79 : vector<1x192x64xbf16> to vector<192x64xbf16>
    %cst_71 = arith.constant dense<0.000000e+00> : vector<64x64xf32>
    %81 = tpu.matmul %78, %80, %cst_71 {dimension_numbers = #tpu.dot_dimension_numbers<[1], [0], [0], [1], [0, 0, 1, 1], [], []>} : vector<64x192xbf16>, vector<192x64xbf16>, vector<64x64xf32> -> vector<64x64xf32>
    %82 = arith.addf %71, %81 : vector<64x64xf32>
    %c0_72 = arith.constant 0 : index
    %c0_73 = arith.constant 0 : index
    %83 = vector.load %arg8[%c0_72, %c0_73] : memref<1x64xf32, #tpu.memory_space<vmem>>, vector<1x64xf32>
    %84 = vector.broadcast %83 : vector<1x64xf32> to vector<64x64xf32>
    %85 = arith.mulf %82, %84 : vector<64x64xf32>
    %c0_74 = arith.constant 0 : index
    %c0_75 = arith.constant 0 : index
    %86 = vector.load %arg9[%c0_74, %c0_75] : memref<1x64xf32, #tpu.memory_space<vmem>>, vector<1x64xf32>
    %87 = vector.broadcast %86 : vector<1x64xf32> to vector<64x64xf32>
    %88 = arith.addf %85, %87 : vector<64x64xf32>
    %cst_76 = arith.constant 0.000000e+00 : f32
    %89 = vector.broadcast %cst_76 : f32 to vector<64x64xf32>
    %90 = arith.maximumf %88, %89 : vector<64x64xf32>
    %91 = arith.truncf %90 : vector<64x64xf32> to vector<64x64xbf16>
    %c0_77 = arith.constant 0 : index
    %c0_78 = arith.constant 0 : index
    %92 = vector.load %arg5[%c0_77, %c0_78] : memref<64x128xbf16, #tpu.memory_space<vmem>>, vector<64x128xbf16>
    %cst_79 = arith.constant dense<0.000000e+00> : vector<64x128xf32>
    %93 = tpu.matmul %91, %92, %cst_79 {dimension_numbers = #tpu.dot_dimension_numbers<[1], [0], [0], [1], [0, 0, 1, 1], [], []>} : vector<64x64xbf16>, vector<64x128xbf16>, vector<64x128xf32> -> vector<64x128xf32>
    %c1_80 = arith.constant 1 : index
    %c0_81 = arith.constant 0 : index
    %c0_82 = arith.constant 0 : index
    %94 = vector.load %arg13[%c1_80, %c0_81, %c0_82] : memref<6x16x128xf32, #tpu.memory_space<vmem>>, vector<4x16x128xf32>
    %95 = vector.shape_cast %94 : vector<4x16x128xf32> to vector<64x128xf32>
    %c0_83 = arith.constant 0 : index
    %c0_84 = arith.constant 0 : index
    %96 = vector.load %arg10[%c0_83, %c0_84] : memref<1x128xf32, #tpu.memory_space<vmem>>, vector<1x128xf32>
    %97 = vector.broadcast %96 : vector<1x128xf32> to vector<64x128xf32>
    %98 = arith.mulf %93, %97 : vector<64x128xf32>
    %c0_85 = arith.constant 0 : index
    %c0_86 = arith.constant 0 : index
    %99 = vector.load %arg11[%c0_85, %c0_86] : memref<1x128xf32, #tpu.memory_space<vmem>>, vector<1x128xf32>
    %100 = vector.broadcast %99 : vector<1x128xf32> to vector<64x128xf32>
    %101 = arith.addf %98, %100 : vector<64x128xf32>
    %102 = arith.addf %101, %95 : vector<64x128xf32>
    %cst_87 = arith.constant 0.000000e+00 : f32
    %103 = vector.broadcast %cst_87 : f32 to vector<64x128xf32>
    %104 = arith.maximumf %102, %103 : vector<64x128xf32>
    %105 = vector.shape_cast %104 : vector<64x128xf32> to vector<1x4x16x128xf32>
    %c0_88 = arith.constant 0 : index
    %c0_89 = arith.constant 0 : index
    %c0_90 = arith.constant 0 : index
    %c0_91 = arith.constant 0 : index
    %106 = vector.load %arg12[%c0_88, %c0_89, %c0_90, %c0_91] : memref<1x4x16x128xf32, #tpu.memory_space<vmem>>, vector<1x4x16x128xf32>
    tpu.vector_store %arg12[%c0_88, %c0_89, %c0_90, %c0_91], %105 {strides = array<i32>} : memref<1x4x16x128xf32, #tpu.memory_space<vmem>>, vector<1x4x16x128xf32>,
    return
  }
  func.func @transform_1(%arg0: i32, %arg1: i32) -> (i32, i32) {
    %c0_i32 = arith.constant 0 : i32
    %c0_i32_0 = arith.constant 0 : i32
    %c0_i32_1 = arith.constant 0 : i32
    return %c0_i32, %c0_i32_0 : i32, i32
  }
  func.func @transform_2(%arg0: i32, %arg1: i32) -> (i32, i32, i32) {
    %c0_i32 = arith.constant 0 : i32
    %c0_i32_0 = arith.constant 0 : i32
    %c0_i32_1 = arith.constant 0 : i32
    %c0_i32_2 = arith.constant 0 : i32
    return %c0_i32, %c0_i32_0, %c0_i32_1 : i32, i32, i32
  }
  func.func @transform_3(%arg0: i32, %arg1: i32) -> (i32, i32) {
    %c0_i32 = arith.constant 0 : i32
    %c0_i32_0 = arith.constant 0 : i32
    %c0_i32_1 = arith.constant 0 : i32
    return %c0_i32, %c0_i32_0 : i32, i32
  }
  func.func @transform_4(%arg0: i32, %arg1: i32) -> (i32, i32) {
    %c0_i32 = arith.constant 0 : i32
    %c0_i32_0 = arith.constant 0 : i32
    %c0_i32_1 = arith.constant 0 : i32
    return %c0_i32, %c0_i32_0 : i32, i32
  }
  func.func @transform_5(%arg0: i32, %arg1: i32) -> (i32, i32) {
    %c0_i32 = arith.constant 0 : i32
    %c0_i32_0 = arith.constant 0 : i32
    %c0_i32_1 = arith.constant 0 : i32
    return %c0_i32, %c0_i32_0 : i32, i32
  }
  func.func @transform_6(%arg0: i32, %arg1: i32) -> (i32, i32) {
    %c0_i32 = arith.constant 0 : i32
    %c0_i32_0 = arith.constant 0 : i32
    %c0_i32_1 = arith.constant 0 : i32
    return %c0_i32, %c0_i32_0 : i32, i32
  }
  func.func @transform_7(%arg0: i32, %arg1: i32) -> (i32, i32) {
    %c0_i32 = arith.constant 0 : i32
    %c0_i32_0 = arith.constant 0 : i32
    %c0_i32_1 = arith.constant 0 : i32
    return %c0_i32, %c0_i32_0 : i32, i32
  }
  func.func @transform_8(%arg0: i32, %arg1: i32) -> (i32, i32) {
    %c0_i32 = arith.constant 0 : i32
    %c0_i32_0 = arith.constant 0 : i32
    %c0_i32_1 = arith.constant 0 : i32
    return %c0_i32, %c0_i32_0 : i32, i32
  }
  func.func @transform_9(%arg0: i32, %arg1: i32) -> (i32, i32) {
    %c0_i32 = arith.constant 0 : i32
    %c0_i32_0 = arith.constant 0 : i32
    %c0_i32_1 = arith.constant 0 : i32
    return %c0_i32, %c0_i32_0 : i32, i32
  }
  func.func @transform_10(%arg0: i32, %arg1: i32) -> (i32, i32, i32, i32) {
    %c0_i32 = arith.constant 0 : i32
    %c0_i32_0 = arith.constant 0 : i32
    %c0_i32_1 = arith.constant 0 : i32
    return %arg0, %arg1, %c0_i32, %c0_i32_0 : i32, i32, i32, i32
  }
}

</mosaic_0001>

<llo_original>
// kernel: tpu_custom_call.1
$region0: #{tpu_custom_call.1}
  #allocation0 [shape = 'u32[]', space=smem, size = 0x4, offset = 0x4, fixed_abs, tag = 'smem constant byte address 0x4 - core index']
  #allocation1 [shape = 'u32[144,128]{1,0:T(1,128)}', space=vmem, size = 0x12000, scoped, tag = 'internal scratch']
  #allocation2 [shape = 'f32[6,16,128]{2,1,0:T(8,128)}', space=vmem, size = 0xc000, scoped, tag = 'scratch operand']
  #allocation3 [shape = 'bf16[6,18,64]{2,1,0:T(8,128)(2,1)}', space=vmem, size = 0x9000, scoped, tag = 'scratch operand']
  #allocation4 [shape = 's32[3]{0}', space=sflag, size = 0xc, scoped, tag = 'scratch operand']
  #allocation7 [shape = 's32[]', space=sflag, size = 0x4, offset = 0, fixed_abs, tag = 'sflag constant byte address 0x0 - dummy sync flag']
  #allocation8 [shape = 's32[]', space=sflag, size = 0x4, offset = 0, fixed_abs, tag = 'sflag constant byte address 0x0 - dummy sync flag']
  #allocation9 [shape = 's32[]', space=sflag, size = 0x4, offset = 0, fixed_abs, tag = 'sflag constant byte address 0x0 - dummy sync flag']
  %s0 = inlined_call_operand.vmem [shape: f32[2,8,16,128], index: 0, kind: input, shape index: {}]
  %s1 = inlined_call_operand.vmem [shape: bf16[128,64], index: 1, kind: input, shape index: {}]
  %s2 = inlined_call_operand.vmem [shape: bf16[3,192,64], index: 2, kind: input, shape index: {}]
  %s3 = inlined_call_operand.vmem [shape: bf16[64,128], index: 3, kind: input, shape index: {}]
  %s4 = inlined_call_operand.vmem [shape: f32[1,64], index: 4, kind: input, shape index: {}]
  %s5 = inlined_call_operand.vmem [shape: f32[1,64], index: 5, kind: input, shape index: {}]
  %s6 = inlined_call_operand.vmem [shape: f32[1,64], index: 6, kind: input, shape index: {}]
  %s7 = inlined_call_operand.vmem [shape: f32[1,64], index: 7, kind: input, shape index: {}]
  %s8 = inlined_call_operand.vmem [shape: f32[1,128], index: 8, kind: input, shape index: {}]
  %s9 = inlined_call_operand.vmem [shape: f32[1,128], index: 9, kind: input, shape index: {}]
  %s10 = inlined_call_operand.hbm [shape: f32[2,8,16,128], index: 10, kind: output, shape index: {}]
  %s11 = sld [smem:[#allocation0]]
  $region195: #{tpu_custom_call.1} parent=0
    _
  %s13 = ssub.s32 1, %s11
  %s14 = scalar_select 0, %s13, %s11
  $region1: #{tpu_custom_call.1} parent=0
    #allocation5 [shape = 'u8[65536]{0}', space=vmem, size = 0x10000, scoped, tag = 'output window, operand 0']
    #allocation6 [shape = 's32[2]{0}', space=sflag, size = 0x8, scoped, tag = 'scoped memory for tpu_custom_call.1']
    %15 = vsyncpa [#allocation6], 0
    %s16 = scalar_lea.sflag [#allocation6], 1
    %17 = vsyncpa %s16, 0
    loop: start=0, step=1, limit=6
    $region2: #{tpu_custom_call.1} parent=1 // loop_pre_header
      _
    $region3: #{tpu_custom_call.1} parent=1 // loop_header
      %s19 = sphi 0, %s23
      %p20 = scmp.ge.s32.totalorder %s19, 6
      %s26 = sphi 0, %s38
      %s27 = sphi 0, %s34
      %s28 = sphi 0, %s26
      %s29 = sphi 0, %s27
      %s30 = sphi 0, %s28
      %s31 = sphi 0, %s29
      %s39 = sphi 0, %s39
      %s41 = sphi 0, %s39
      %s42 = sphi 0, %s41
      %s56 = sphi 0, %s42
      %s60 = sphi 0, %s60
      %s62 = sphi 0, %s60
      %s63 = sphi 0, %s62
      %s77 = sphi 0, %s63
      %s81 = sphi 0, %s81
      %s83 = sphi 0, %s81
      %s84 = sphi 0, %s83
      %s98 = sphi 0, %s84
      %s102 = sphi 0, %s102
      %s104 = sphi 0, %s102
      %s105 = sphi 0, %s104
      %s119 = sphi 0, %s105
      %s123 = sphi 0, %s123
      %s125 = sphi 0, %s123
      %s126 = sphi 0, %s125
      %s140 = sphi 0, %s126
      %s144 = sphi 0, %s144
      %s146 = sphi 0, %s144
      %s147 = sphi 0, %s146
      %s161 = sphi 0, %s147
      %s165 = sphi 0, %s165
      %s167 = sphi 0, %s165
      %s168 = sphi 0, %s167
      %s182 = sphi 0, %s168
      %s186 = sphi 0, %s186
      %s188 = sphi 0, %s186
      %s189 = sphi 0, %s188
      %s203 = sphi 0, %s189
      %s207 = sphi 0, %s207
      %s209 = sphi 0, %s207
      %s210 = sphi 0, %s209
      %s224 = sphi 0, %s210
      %s232 = sphi 0, %s234
      %s235 = sphi 0, %s232
      %s236 = sphi 0, %s235
      %s252 = sphi 0, %s236
    $region4: #{tpu_custom_call.1} parent=1 // loop_header_branch
      %22 = sbr.rel (%p20) target = $region8
    $region5: #{tpu_custom_call.1} parent=1 // loop_body
      %s24 = ssub.s32 %s19, 1
      %s25 = ssub.s32 %s19, 2
      %s32 = sadd.s32 1, %s27
      %p33 = scmp.ge.s32.totalorder %s32, 2
      %s34 = scalar_select %p33, 0, %s32
      %s35 = sadd.s32 1, %s26
      %s36 = scalar_select %p33, %s35, %s26
      %p37 = scmp.ge.s32.totalorder %s36, 2
      %s38 = scalar_select %p37, 0, %s36
      %s40 = sadd.s32 %s39, 1
      %p43 = scmp.eq.s32.totalorder %s19, 3
      %p44 = scmp.ne.s32.totalorder %s39, %s41
      %p45 = scmp.eq.s32.totalorder %s19, 0
      %p46 = por %p44, %p45
      %p47 = scmp.ne.s32.totalorder %s39, %s41
      %p48 = scmp.eq.s32.totalorder %s24, 3
      %p49 = por %p47, %p48
      %p50 = scmp.ne.s32.totalorder %s41, %s42
      %p51 = scmp.eq.s32.totalorder %s24, 0
      %p52 = por %p50, %p51
      %p53 = scmp.ne.s32.totalorder %s41, %s42
      %p54 = scmp.eq.s32.totalorder %s25, 3
      %p55 = por %p53, %p54
      %p57 = scmp.ne.s32.totalorder %s42, %s56
      %p58 = scmp.eq.s32.totalorder %s25, 0
      %p59 = por %p57, %p58
      %s61 = sadd.s32 %s60, 1
      %p64 = scmp.eq.s32.totalorder %s19, 3
      %p65 = scmp.ne.s32.totalorder %s60, %s62
      %p66 = scmp.eq.s32.totalorder %s19, 0
      %p67 = por %p65, %p66
      %p68 = scmp.ne.s32.totalorder %s60, %s62
      %p69 = scmp.eq.s32.totalorder %s24, 3
      %p70 = por %p68, %p69
      %p71 = scmp.ne.s32.totalorder %s62, %s63
      %p72 = scmp.eq.s32.totalorder %s24, 0
      %p73 = por %p71, %p72
      %p74 = scmp.ne.s32.totalorder %s62, %s63
      %p75 = scmp.eq.s32.totalorder %s25, 3
      %p76 = por %p74, %p75
      %p78 = scmp.ne.s32.totalorder %s63, %s77
      %p79 = scmp.eq.s32.totalorder %s25, 0
      %p80 = por %p78, %p79
      %s82 = sadd.s32 %s81, 1
      %p85 = scmp.eq.s32.totalorder %s19, 3
      %p86 = scmp.ne.s32.totalorder %s81, %s83
      %p87 = scmp.eq.s32.totalorder %s19, 0
      %p88 = por %p86, %p87
      %p89 = scmp.ne.s32.totalorder %s81, %s83
      %p90 = scmp.eq.s32.totalorder %s24, 3
      %p91 = por %p89, %p90
      %p92 = scmp.ne.s32.totalorder %s83, %s84
      %p93 = scmp.eq.s32.totalorder %s24, 0
      %p94 = por %p92, %p93
      %p95 = scmp.ne.s32.totalorder %s83, %s84
      %p96 = scmp.eq.s32.totalorder %s25, 3
      %p97 = por %p95, %p96
      %p99 = scmp.ne.s32.totalorder %s84, %s98
      %p100 = scmp.eq.s32.totalorder %s25, 0
      %p101 = por %p99, %p100
      %s103 = sadd.s32 %s102, 1
      %p106 = scmp.eq.s32.totalorder %s19, 3
      %p107 = scmp.ne.s32.totalorder %s102, %s104
      %p108 = scmp.eq.s32.totalorder %s19, 0
      %p109 = por %p107, %p108
      %p110 = scmp.ne.s32.totalorder %s102, %s104
      %p111 = scmp.eq.s32.totalorder %s24, 3
      %p112 = por %p110, %p111
      %p113 = scmp.ne.s32.totalorder %s104, %s105
      %p114 = scmp.eq.s32.totalorder %s24, 0
      %p115 = por %p113, %p114
      %p116 = scmp.ne.s32.totalorder %s104, %s105
      %p117 = scmp.eq.s32.totalorder %s25, 3
      %p118 = por %p116, %p117
      %p120 = scmp.ne.s32.totalorder %s105, %s119
      %p121 = scmp.eq.s32.totalorder %s25, 0
      %p122 = por %p120, %p121
      %s124 = sadd.s32 %s123, 1
      %p127 = scmp.eq.s32.totalorder %s19, 3
      %p128 = scmp.ne.s32.totalorder %s123, %s125
      %p129 = scmp.eq.s32.totalorder %s19, 0
      %p130 = por %p128, %p129
      %p131 = scmp.ne.s32.totalorder %s123, %s125
      %p132 = scmp.eq.s32.totalorder %s24, 3
      %p133 = por %p131, %p132
      %p134 = scmp.ne.s32.totalorder %s125, %s126
      %p135 = scmp.eq.s32.totalorder %s24, 0
      %p136 = por %p134, %p135
      %p137 = scmp.ne.s32.totalorder %s125, %s126
      %p138 = scmp.eq.s32.totalorder %s25, 3
      %p139 = por %p137, %p138
      %p141 = scmp.ne.s32.totalorder %s126, %s140
      %p142 = scmp.eq.s32.totalorder %s25, 0
      %p143 = por %p141, %p142
      %s145 = sadd.s32 %s144, 1
      %p148 = scmp.eq.s32.totalorder %s19, 3
      %p149 = scmp.ne.s32.totalorder %s144, %s146
      %p150 = scmp.eq.s32.totalorder %s19, 0
      %p151 = por %p149, %p150
      %p152 = scmp.ne.s32.totalorder %s144, %s146
      %p153 = scmp.eq.s32.totalorder %s24, 3
      %p154 = por %p152, %p153
      %p155 = scmp.ne.s32.totalorder %s146, %s147
      %p156 = scmp.eq.s32.totalorder %s24, 0
      %p157 = por %p155, %p156
      %p158 = scmp.ne.s32.totalorder %s146, %s147
      %p159 = scmp.eq.s32.totalorder %s25, 3
      %p160 = por %p158, %p159
      %p162 = scmp.ne.s32.totalorder %s147, %s161
      %p163 = scmp.eq.s32.totalorder %s25, 0
      %p164 = por %p162, %p163
      %s166 = sadd.s32 %s165, 1
      %p169 = scmp.eq.s32.totalorder %s19, 3
      %p170 = scmp.ne.s32.totalorder %s165, %s167
      %p171 = scmp.eq.s32.totalorder %s19, 0
      %p172 = por %p170, %p171
      %p173 = scmp.ne.s32.totalorder %s165, %s167
      %p174 = scmp.eq.s32.totalorder %s24, 3
      %p175 = por %p173, %p174
      %p176 = scmp.ne.s32.totalorder %s167, %s168
      %p177 = scmp.eq.s32.totalorder %s24, 0
      %p178 = por %p176, %p177
      %p179 = scmp.ne.s32.totalorder %s167, %s168
      %p180 = scmp.eq.s32.totalorder %s25, 3
      %p181 = por %p179, %p180
      %p183 = scmp.ne.s32.totalorder %s168, %s182
      %p184 = scmp.eq.s32.totalorder %s25, 0
      %p185 = por %p183, %p184
      %s187 = sadd.s32 %s186, 1
      %p190 = scmp.eq.s32.totalorder %s19, 3
      %p191 = scmp.ne.s32.totalorder %s186, %s188
      %p192 = scmp.eq.s32.totalorder %s19, 0
      %p193 = por %p191, %p192
      %p194 = scmp.ne.s32.totalorder %s186, %s188
      %p195 = scmp.eq.s32.totalorder %s24, 3
      %p196 = por %p194, %p195
      %p197 = scmp.ne.s32.totalorder %s188, %s189
      %p198 = scmp.eq.s32.totalorder %s24, 0
      %p199 = por %p197, %p198
      %p200 = scmp.ne.s32.totalorder %s188, %s189
      %p201 = scmp.eq.s32.totalorder %s25, 3
      %p202 = por %p200, %p201
      %p204 = scmp.ne.s32.totalorder %s189, %s203
      %p205 = scmp.eq.s32.totalorder %s25, 0
      %p206 = por %p204, %p205
      %s208 = sadd.s32 %s207, 1
      %p211 = scmp.eq.s32.totalorder %s19, 3
      %p212 = scmp.ne.s32.totalorder %s207, %s209
      %p213 = scmp.eq.s32.totalorder %s19, 0
      %p214 = por %p212, %p213
      %p215 = scmp.ne.s32.totalorder %s207, %s209
      %p216 = scmp.eq.s32.totalorder %s24, 3
      %p217 = por %p215, %p216
      %p218 = scmp.ne.s32.totalorder %s209, %s210
      %p219 = scmp.eq.s32.totalorder %s24, 0
      %p220 = por %p218, %p219
      %p221 = scmp.ne.s32.totalorder %s209, %s210
      %p222 = scmp.eq.s32.totalorder %s25, 3
      %p223 = por %p221, %p222
      %p225 = scmp.ne.s32.totalorder %s210, %s224
      %p226 = scmp.eq.s32.totalorder %s25, 0
      %p227 = por %p225, %p226
      %s228 = ssub.s32 %s26, %s38
      %s229 = ssub.s32 %s27, %s34
      %s230 = sor.u32 %s228, %s229
      %p231 = scmp.eq.s32.totalorder %s230, 0
      %s233 = sadd.s32 %s232, 1
      %s234 = scalar_select %p231, %s232, %s233
      %p237 = pneg %p231
      %p238 = scmp.eq.s32.totalorder %s19, 3
      %p239 = por %p237, %p238
      %p240 = scmp.ne.s32.totalorder %s232, %s235
      %p241 = scmp.eq.s32.totalorder %s19, 0
      %p242 = por %p240, %p241
      %p243 = scmp.ne.s32.totalorder %s232, %s235
      %p244 = scmp.eq.s32.totalorder %s24, 3
      %p245 = por %p243, %p244
      %p246 = scmp.ne.s32.totalorder %s235, %s236
      %p247 = scmp.eq.s32.totalorder %s24, 0
      %p248 = por %p246, %p247
      %p249 = scmp.ne.s32.totalorder %s235, %s236
      %p250 = scmp.eq.s32.totalorder %s25, 3
      %p251 = por %p249, %p250
      %p253 = scmp.ne.s32.totalorder %s236, %s252
      %p254 = scmp.eq.s32.totalorder %s25, 0
      %p255 = por %p253, %p254
      %p256 = scmp.le.s32.totalorder 1, %s19
      %p257 = scmp.lt.s32.totalorder %s19, 5
      %p258 = pnand %p256, %p257
      %p259 = pneg %p258
      // Predicated region
      $region9: #{tpu_custom_call.1} parent=5 // pred_check
        _
      $region10: #{tpu_custom_call.1} parent=5 // pred_check_branch
        %261 = sbr.rel (%p258) target = $region12
      $region11: #{tpu_custom_call.1} parent=5 // pred_region
        %s262 = ssub.s32 %s19, 1
        // Predicated region
        $region13: #{tpu_custom_call.1} parent=11 // pred_check
          %p263 = pneg %p52
        $region14: #{tpu_custom_call.1} parent=11 // pred_check_branch
          %265 = sbr.rel (%p263) target = $region16
        $region15: #{tpu_custom_call.1} parent=11 // pred_region
          _
        $region16: #{tpu_custom_call.1} parent=11 // pred_fallthru
          _
        // Predicated region
        $region17: #{tpu_custom_call.1} parent=11 // pred_check
          %p266 = pneg %p73
        $region18: #{tpu_custom_call.1} parent=11 // pred_check_branch
          %268 = sbr.rel (%p266) target = $region20
        $region19: #{tpu_custom_call.1} parent=11 // pred_region
          _
        $region20: #{tpu_custom_call.1} parent=11 // pred_fallthru
          _
        // Predicated region
        $region21: #{tpu_custom_call.1} parent=11 // pred_check
          %p269 = pneg %p94
        $region22: #{tpu_custom_call.1} parent=11 // pred_check_branch
          %271 = sbr.rel (%p269) target = $region24
        $region23: #{tpu_custom_call.1} parent=11 // pred_region
          _
        $region24: #{tpu_custom_call.1} parent=11 // pred_fallthru
          _
        // Predicated region
        $region25: #{tpu_custom_call.1} parent=11 // pred_check
          %p272 = pneg %p115
        $region26: #{tpu_custom_call.1} parent=11 // pred_check_branch
          %274 = sbr.rel (%p272) target = $region28
        $region27: #{tpu_custom_call.1} parent=11 // pred_region
          _
        $region28: #{tpu_custom_call.1} parent=11 // pred_fallthru
          _
        // Predicated region
        $region29: #{tpu_custom_call.1} parent=11 // pred_check
          %p275 = pneg %p136
        $region30: #{tpu_custom_call.1} parent=11 // pred_check_branch
          %277 = sbr.rel (%p275) target = $region32
        $region31: #{tpu_custom_call.1} parent=11 // pred_region
          _
        $region32: #{tpu_custom_call.1} parent=11 // pred_fallthru
          _
        // Predicated region
        $region33: #{tpu_custom_call.1} parent=11 // pred_check
          %p278 = pneg %p157
        $region34: #{tpu_custom_call.1} parent=11 // pred_check_branch
          %280 = sbr.rel (%p278) target = $region36
        $region35: #{tpu_custom_call.1} parent=11 // pred_region
          _
        $region36: #{tpu_custom_call.1} parent=11 // pred_fallthru
          _
        // Predicated region
        $region37: #{tpu_custom_call.1} parent=11 // pred_check
          %p281 = pneg %p178
        $region38: #{tpu_custom_call.1} parent=11 // pred_check_branch
          %283 = sbr.rel (%p281) target = $region40
        $region39: #{tpu_custom_call.1} parent=11 // pred_region
          _
        $region40: #{tpu_custom_call.1} parent=11 // pred_fallthru
          _
        // Predicated region
        $region41: #{tpu_custom_call.1} parent=11 // pred_check
          %p284 = pneg %p199
        $region42: #{tpu_custom_call.1} parent=11 // pred_check_branch
          %286 = sbr.rel (%p284) target = $region44
        $region43: #{tpu_custom_call.1} parent=11 // pred_region
          _
        $region44: #{tpu_custom_call.1} parent=11 // pred_fallthru
          _
        // Predicated region
        $region45: #{tpu_custom_call.1} parent=11 // pred_check
          %p287 = pneg %p220
        $region46: #{tpu_custom_call.1} parent=11 // pred_check_branch
          %289 = sbr.rel (%p287) target = $region48
        $region47: #{tpu_custom_call.1} parent=11 // pred_region
          _
        $region48: #{tpu_custom_call.1} parent=11 // pred_fallthru
          _
      $region12: #{tpu_custom_call.1} parent=5 // pred_fallthru
        _
      %p290 = scmp.lt.s32.totalorder %s19, 4
      // Predicated region
      $region49: #{tpu_custom_call.1} parent=5 // pred_check
        %p291 = pneg %p290
      $region50: #{tpu_custom_call.1} parent=5 // pred_check_branch
        %293 = sbr.rel (%p291) target = $region52
      $region51: #{tpu_custom_call.1} parent=5 // pred_region
        _
      $region52: #{tpu_custom_call.1} parent=5 // pred_fallthru
        _
      %p294 = scmp.le.s32.totalorder 1, %s19
      %p295 = scmp.lt.s32.totalorder %s19, 5
      %p296 = pnand %p294, %p295
      %p297 = pneg %p296
      // Predicated region
      $region53: #{tpu_custom_call.1} parent=5 // pred_check
        _
      $region54: #{tpu_custom_call.1} parent=5 // pred_check_branch
        %299 = sbr.rel (%p296) target = $region56
      $region55: #{tpu_custom_call.1} parent=5 // pred_region
        %s300 = ssub.s32 %s19, 1
        %p301 = pneg %p52
        %p302 = pneg %p49
        %p303 = pneg %p73
        %p304 = pneg %p70
        %p305 = pneg %p94
        %p306 = pneg %p91
        %p307 = pneg %p115
        %p308 = pneg %p112
        %p309 = pneg %p136
        %p310 = pneg %p133
        %p311 = pneg %p157
        %p312 = pneg %p154
        %p313 = pneg %p178
        %p314 = pneg %p175
        %p315 = pneg %p199
        %p316 = pneg %p196
        %p317 = pneg %p220
        %p318 = pneg %p217
        %p319 = pneg %p248
        %p320 = pneg %p245
        %s321 = sand.u32 %s235, 1
        %s322 = scalar_lea.sflag [#allocation6], %s321
        %s323 = sand.u32 %s235, 1
        %s324 = smul.addr %s323, 64
        %s325 = scalar_lea.vmem [#allocation5], %s324
        %s326 = smul.u32 4, %s29
        %s328 = smul.u32 %s29, 4
        %s329 = smul.u32 %s328, 16
        %s330 = smul.u32 %s28, 128
        %s331 = sadd.s32 %s329, %s330
        %s332 = scalar_lea.vmem %s0, %s331
        %s333 = scalar_lea.vmem [#allocation2], 16
        %s334 = scalar_lea.sflag [#allocation4], 1
        %p336 = scmp.lt.u32.totalorder 64, 8
        %p337 = pneg %p336
        // Predicated region
        $region57: #{tpu_custom_call.1} parent=55 // pred_check
          _
        $region58: #{tpu_custom_call.1} parent=55 // pred_check_branch
          %339 = sbr.rel (%p336) target = $region60
        $region59: #{tpu_custom_call.1} parent=55 // pred_region
          %s355 = sand.u32 64, 7
          %p356 = scmp.eq.s32.totalorder %s355, 0
          // Predicated region
          $region72: #{tpu_custom_call.1} parent=59 // pred_check
            %p357 = pneg %p356
          $region73: #{tpu_custom_call.1} parent=59 // pred_check_branch
            %359 = sbr.rel (%p357) target = $region75
          $region74: #{tpu_custom_call.1} parent=59 // pred_region
            loop: start=0, step=1, limit=1
            $region76: #{tpu_custom_call.1} parent=74 // loop_pre_header
              _
            $region77: #{tpu_custom_call.1} parent=74 // loop_header
              %s361 = sphi 0, %s365
              %p362 = scmp.ge.s32.totalorder %s361, 1
              %s366 = sphi %s332, %s332
              %s367 = sphi %s333, %s333
            $region78: #{tpu_custom_call.1} parent=74 // loop_header_branch
              %364 = sbr.rel (%p362) target = $region82
            $region79: #{tpu_custom_call.1} parent=74 // loop_body
              %v368 = vld [vmem:[%s366] sm:$0xff]
              %369 = vst [vmem:[%s367] sm:$0xff] %v368
              %v370 = vld [vmem:[%s366 + $0x8] sm:$0xff]
              %371 = vst [vmem:[%s367 + $0x8] sm:$0xff] %v370
              %v372 = vld [vmem:[%s366 + $0x10] sm:$0xff]
              %373 = vst [vmem:[%s367 + $0x10] sm:$0xff] %v372
              %v374 = vld [vmem:[%s366 + $0x18] sm:$0xff]
              %375 = vst [vmem:[%s367 + $0x18] sm:$0xff] %v374
              %v376 = vld [vmem:[%s366 + $0x20] sm:$0xff]
              %377 = vst [vmem:[%s367 + $0x20] sm:$0xff] %v376
              %v378 = vld [vmem:[%s366 + $0x28] sm:$0xff]
              %379 = vst [vmem:[%s367 + $0x28] sm:$0xff] %v378
              %v380 = vld [vmem:[%s366 + $0x30] sm:$0xff]
              %381 = vst [vmem:[%s367 + $0x30] sm:$0xff] %v380
              %v382 = vld [vmem:[%s366 + $0x38] sm:$0xff]
              %383 = vst [vmem:[%s367 + $0x38] sm:$0xff] %v382
            $region80: #{tpu_custom_call.1} parent=74 // loop_footer
              %s365 = sadd.s32 1, %s361
            $region81: #{tpu_custom_call.1} parent=74 // loop_footer_branch
              %360 = sbr.rel target = $region77
            $region82: #{tpu_custom_call.1} parent=74 // loop_exit
              _
          $region75: #{tpu_custom_call.1} parent=59 // pred_fallthru
            _
          %p384 = pneg %p356
          // Predicated region
          $region83: #{tpu_custom_call.1} parent=59 // pred_check
            _
          $region84: #{tpu_custom_call.1} parent=59 // pred_check_branch
            %386 = sbr.rel (%p356) target = $region86
          $region85: #{tpu_custom_call.1} parent=59 // pred_region
            %s387 = sand.u32 64, 7
          $region86: #{tpu_custom_call.1} parent=59 // pred_fallthru
            _
        $region60: #{tpu_custom_call.1} parent=55 // pred_fallthru
          _
        // Predicated region
        $region61: #{tpu_custom_call.1} parent=55 // pred_check
          %p340 = pneg %p336
        $region62: #{tpu_custom_call.1} parent=55 // pred_check_branch
          %342 = sbr.rel (%p340) target = $region64
        $region63: #{tpu_custom_call.1} parent=55 // pred_region
          %s343 = sshll.u32 1, 64
          %s344 = ssub.s32 %s343, 1
          loop: start=0, step=1, limit=1
          $region65: #{tpu_custom_call.1} parent=63 // loop_pre_header
            _
          $region66: #{tpu_custom_call.1} parent=63 // loop_header
            %s346 = sphi 0, %s350
            %p347 = scmp.ge.s32.totalorder %s346, 1
            %s351 = sphi %s332, %s332
            %s352 = sphi %s333, %s333
          $region67: #{tpu_custom_call.1} parent=63 // loop_header_branch
            %349 = sbr.rel (%p347) target = $region71
          $region68: #{tpu_custom_call.1} parent=63 // loop_body
            %v353 = vld [vmem:[%s351] sm:%s344]
            %354 = vst [vmem:[%s352] sm:%s344] %v353
          $region69: #{tpu_custom_call.1} parent=63 // loop_footer
            %s350 = sadd.s32 1, %s346
          $region70: #{tpu_custom_call.1} parent=63 // loop_footer_branch
            %345 = sbr.rel target = $region66
          $region71: #{tpu_custom_call.1} parent=63 // loop_exit
            _
        $region64: #{tpu_custom_call.1} parent=55 // pred_fallthru
          _
        // Predicated region
        $region87: #{tpu_custom_call.1} parent=55 // pred_check
          _
        $region88: #{tpu_custom_call.1} parent=55 // pred_check_branch
          %390 = sbr.rel (0) target = $region90
        $region89: #{tpu_custom_call.1} parent=55 // pred_region
          %391 = vsyncadd %s334, 1024
        $region90: #{tpu_custom_call.1} parent=55 // pred_fallthru
          _
        %p392 = scmp.gt.s32.totalorder %s29, 0
        // Predicated region
        $region91: #{tpu_custom_call.1} parent=55 // pred_check
          %p393 = pneg %p392
        $region92: #{tpu_custom_call.1} parent=55 // pred_check_branch
          %395 = sbr.rel (%p393) target = $region94
        $region93: #{tpu_custom_call.1} parent=55 // pred_region
          %s396 = ssub.s32 %s328, 1
          %s397 = smul.u32 %s396, 16
          %s398 = sadd.s32 %s397, %s330
          %s399 = scalar_lea.vmem %s0, %s398
          %p401 = scmp.lt.u32.totalorder 16, 8
          %p402 = pneg %p401
          // Predicated region
          $region95: #{tpu_custom_call.1} parent=93 // pred_check
            _
          $region96: #{tpu_custom_call.1} parent=93 // pred_check_branch
            %404 = sbr.rel (%p401) target = $region98
          $region97: #{tpu_custom_call.1} parent=93 // pred_region
            %s420 = sand.u32 16, 7
            %p421 = scmp.eq.s32.totalorder %s420, 0
            // Predicated region
            $region110: #{tpu_custom_call.1} parent=97 // pred_check
              %p422 = pneg %p421
            $region111: #{tpu_custom_call.1} parent=97 // pred_check_branch
              %424 = sbr.rel (%p422) target = $region113
            $region112: #{tpu_custom_call.1} parent=97 // pred_region
              loop: start=0, step=1, limit=1
              $region114: #{tpu_custom_call.1} parent=112 // loop_pre_header
                _
              $region115: #{tpu_custom_call.1} parent=112 // loop_header
                %s426 = sphi 0, %s430
                %p427 = scmp.ge.s32.totalorder %s426, 1
                %s431 = sphi %s399, %s399
                %s432 = sphi [#allocation2], [#allocation2]
              $region116: #{tpu_custom_call.1} parent=112 // loop_header_branch
                %429 = sbr.rel (%p427) target = $region120
              $region117: #{tpu_custom_call.1} parent=112 // loop_body
                %v433 = vld [vmem:[%s431] sm:$0xff]
                %434 = vst [vmem:[%s432] sm:$0xff] %v433
                %v435 = vld [vmem:[%s431 + $0x8] sm:$0xff]
                %436 = vst [vmem:[%s432 + $0x8] sm:$0xff] %v435
              $region118: #{tpu_custom_call.1} parent=112 // loop_footer
                %s430 = sadd.s32 1, %s426
              $region119: #{tpu_custom_call.1} parent=112 // loop_footer_branch
                %425 = sbr.rel target = $region115
              $region120: #{tpu_custom_call.1} parent=112 // loop_exit
                _
            $region113: #{tpu_custom_call.1} parent=97 // pred_fallthru
              _
            %p437 = pneg %p421
            // Predicated region
            $region121: #{tpu_custom_call.1} parent=97 // pred_check
              _
            $region122: #{tpu_custom_call.1} parent=97 // pred_check_branch
              %439 = sbr.rel (%p421) target = $region124
            $region123: #{tpu_custom_call.1} parent=97 // pred_region
              %s440 = sand.u32 16, 7
            $region124: #{tpu_custom_call.1} parent=97 // pred_fallthru
              _
          $region98: #{tpu_custom_call.1} parent=93 // pred_fallthru
            _
          // Predicated region
          $region99: #{tpu_custom_call.1} parent=93 // pred_check
            %p405 = pneg %p401
          $region100: #{tpu_custom_call.1} parent=93 // pred_check_branch
            %407 = sbr.rel (%p405) target = $region102
          $region101: #{tpu_custom_call.1} parent=93 // pred_region
            %s408 = sshll.u32 1, 16
            %s409 = ssub.s32 %s408, 1
            loop: start=0, step=1, limit=1
            $region103: #{tpu_custom_call.1} parent=101 // loop_pre_header
              _
            $region104: #{tpu_custom_call.1} parent=101 // loop_header
              %s411 = sphi 0, %s415
              %p412 = scmp.ge.s32.totalorder %s411, 1
              %s416 = sphi %s399, %s399
              %s417 = sphi [#allocation2], [#allocation2]
            $region105: #{tpu_custom_call.1} parent=101 // loop_header_branch
              %414 = sbr.rel (%p412) target = $region109
            $region106: #{tpu_custom_call.1} parent=101 // loop_body
              %v418 = vld [vmem:[%s416] sm:%s409]
              %419 = vst [vmem:[%s417] sm:%s409] %v418
            $region107: #{tpu_custom_call.1} parent=101 // loop_footer
              %s415 = sadd.s32 1, %s411
            $region108: #{tpu_custom_call.1} parent=101 // loop_footer_branch
              %410 = sbr.rel target = $region104
            $region109: #{tpu_custom_call.1} parent=101 // loop_exit
              _
          $region102: #{tpu_custom_call.1} parent=93 // pred_fallthru
            _
          // Predicated region
          $region125: #{tpu_custom_call.1} parent=93 // pred_check
            _
          $region126: #{tpu_custom_call.1} parent=93 // pred_check_branch
            %443 = sbr.rel (0) target = $region128
          $region127: #{tpu_custom_call.1} parent=93 // pred_region
            %444 = vsyncadd [#allocation4], 256
          $region128: #{tpu_custom_call.1} parent=93 // pred_fallthru
            _
        $region94: #{tpu_custom_call.1} parent=55 // pred_fallthru
          _
        %p445 = scmp.lt.s32.totalorder %s29, 1
        // Predicated region
        $region129: #{tpu_custom_call.1} parent=55 // pred_check
          %p446 = pneg %p445
        $region130: #{tpu_custom_call.1} parent=55 // pred_check_branch
          %448 = sbr.rel (%p446) target = $region132
        $region131: #{tpu_custom_call.1} parent=55 // pred_region
          %s449 = sadd.s32 %s328, 4
          %s450 = smul.u32 %s449, 16
          %s451 = sadd.s32 %s450, %s330
          %s452 = scalar_lea.vmem %s0, %s451
          %s453 = scalar_lea.vmem [#allocation2], 80
          %s454 = scalar_lea.sflag [#allocation4], 2
          %p456 = scmp.lt.u32.totalorder 16, 8
          %p457 = pneg %p456
          // Predicated region
          $region133: #{tpu_custom_call.1} parent=131 // pred_check
            _
          $region134: #{tpu_custom_call.1} parent=131 // pred_check_branch
            %459 = sbr.rel (%p456) target = $region136
          $region135: #{tpu_custom_call.1} parent=131 // pred_region
            %s475 = sand.u32 16, 7
            %p476 = scmp.eq.s32.totalorder %s475, 0
            // Predicated region
            $region148: #{tpu_custom_call.1} parent=135 // pred_check
              %p477 = pneg %p476
            $region149: #{tpu_custom_call.1} parent=135 // pred_check_branch
              %479 = sbr.rel (%p477) target = $region151
            $region150: #{tpu_custom_call.1} parent=135 // pred_region
              loop: start=0, step=1, limit=1
              $region152: #{tpu_custom_call.1} parent=150 // loop_pre_header
                _
              $region153: #{tpu_custom_call.1} parent=150 // loop_header
                %s481 = sphi 0, %s485
                %p482 = scmp.ge.s32.totalorder %s481, 1
                %s486 = sphi %s452, %s452
                %s487 = sphi %s453, %s453
              $region154: #{tpu_custom_call.1} parent=150 // loop_header_branch
                %484 = sbr.rel (%p482) target = $region158
              $region155: #{tpu_custom_call.1} parent=150 // loop_body
                %v488 = vld [vmem:[%s486] sm:$0xff]
                %489 = vst [vmem:[%s487] sm:$0xff] %v488
                %v490 = vld [vmem:[%s486 + $0x8] sm:$0xff]
                %491 = vst [vmem:[%s487 + $0x8] sm:$0xff] %v490
              $region156: #{tpu_custom_call.1} parent=150 // loop_footer
                %s485 = sadd.s32 1, %s481
              $region157: #{tpu_custom_call.1} parent=150 // loop_footer_branch
                %480 = sbr.rel target = $region153
              $region158: #{tpu_custom_call.1} parent=150 // loop_exit
                _
            $region151: #{tpu_custom_call.1} parent=135 // pred_fallthru
              _
            %p492 = pneg %p476
            // Predicated region
            $region159: #{tpu_custom_call.1} parent=135 // pred_check
              _
            $region160: #{tpu_custom_call.1} parent=135 // pred_check_branch
              %494 = sbr.rel (%p476) target = $region162
            $region161: #{tpu_custom_call.1} parent=135 // pred_region
              %s495 = sand.u32 16, 7
            $region162: #{tpu_custom_call.1} parent=135 // pred_fallthru
              _
          $region136: #{tpu_custom_call.1} parent=131 // pred_fallthru
            _
          // Predicated region
          $region137: #{tpu_custom_call.1} parent=131 // pred_check
            %p460 = pneg %p456
          $region138: #{tpu_custom_call.1} parent=131 // pred_check_branch
            %462 = sbr.rel (%p460) target = $region140
          $region139: #{tpu_custom_call.1} parent=131 // pred_region
            %s463 = sshll.u32 1, 16
            %s464 = ssub.s32 %s463, 1
            loop: start=0, step=1, limit=1
            $region141: #{tpu_custom_call.1} parent=139 // loop_pre_header
              _
            $region142: #{tpu_custom_call.1} parent=139 // loop_header
              %s466 = sphi 0, %s470
              %p467 = scmp.ge.s32.totalorder %s466, 1
              %s471 = sphi %s452, %s452
              %s472 = sphi %s453, %s453
            $region143: #{tpu_custom_call.1} parent=139 // loop_header_branch
              %469 = sbr.rel (%p467) target = $region147
            $region144: #{tpu_custom_call.1} parent=139 // loop_body
              %v473 = vld [vmem:[%s471] sm:%s464]
              %474 = vst [vmem:[%s472] sm:%s464] %v473
            $region145: #{tpu_custom_call.1} parent=139 // loop_footer
              %s470 = sadd.s32 1, %s466
            $region146: #{tpu_custom_call.1} parent=139 // loop_footer_branch
              %465 = sbr.rel target = $region142
            $region147: #{tpu_custom_call.1} parent=139 // loop_exit
              _
          $region140: #{tpu_custom_call.1} parent=131 // pred_fallthru
            _
          // Predicated region
          $region163: #{tpu_custom_call.1} parent=131 // pred_check
            _
          $region164: #{tpu_custom_call.1} parent=131 // pred_check_branch
            %498 = sbr.rel (0) target = $region166
          $region165: #{tpu_custom_call.1} parent=131 // pred_region
            %499 = vsyncadd %s454, 256
          $region166: #{tpu_custom_call.1} parent=131 // pred_fallthru
            _
        $region132: #{tpu_custom_call.1} parent=55 // pred_fallthru
          _
        %vm500 = vcmask 516096
        %vm501 = vsmask.f32 256
        %vm502 = vmand %vm500, %vm501
        %v503 = vld [vmem:[#allocation3] sm:$0x1]
        %v504 = vsel %vm502, 0, %v503
        %505 = vst [vmem:[#allocation3] sm:$0x1] %v504
        %v506 = vld [vmem:[#allocation3 + $0xc] sm:$0x1]
        %v507 = vsel %vm502, 0, %v506
        %508 = vst [vmem:[#allocation3 + $0xc] sm:$0x1] %v507
        %v509 = vld [vmem:[#allocation3 + $0x18] sm:$0x1]
        %v510 = vsel %vm502, 0, %v509
        %511 = vst [vmem:[#allocation3 + $0x18] sm:$0x1] %v510
        %v512 = vld [vmem:[#allocation3 + $0x24] sm:$0x1]
        %v513 = vsel %vm502, 0, %v512
        %514 = vst [vmem:[#allocation3 + $0x24] sm:$0x1] %v513
        %v515 = vld [vmem:[#allocation3 + $0x30] sm:$0x1]
        %v516 = vsel %vm502, 0, %v515
        %517 = vst [vmem:[#allocation3 + $0x30] sm:$0x1] %v516
        %v518 = vld [vmem:[#allocation3 + $0x3c] sm:$0x1]
        %v519 = vsel %vm502, 0, %v518
        %520 = vst [vmem:[#allocation3 + $0x3c] sm:$0x1] %v519
        %vm521 = vsmask.f32 7938
        %vm522 = vmand %vm500, %vm521
        %v523 = vld [vmem:[#allocation3 + $0x8] sm:$0x1]
        %v524 = vsel %vm522, 0, %v523
        %525 = vst [vmem:[#allocation3 + $0x8] sm:$0x1] %v524
        %v526 = vld [vmem:[#allocation3 + $0x14] sm:$0x1]
        %v527 = vsel %vm522, 0, %v526
        %528 = vst [vmem:[#allocation3 + $0x14] sm:$0x1] %v527
        %v529 = vld [vmem:[#allocation3 + $0x20] sm:$0x1]
        %v530 = vsel %vm522, 0, %v529
        %531 = vst [vmem:[#allocation3 + $0x20] sm:$0x1] %v530
        %v532 = vld [vmem:[#allocation3 + $0x2c] sm:$0x1]
        %v533 = vsel %vm522, 0, %v532
        %534 = vst [vmem:[#allocation3 + $0x2c] sm:$0x1] %v533
        %v535 = vld [vmem:[#allocation3 + $0x38] sm:$0x1]
        %v536 = vsel %vm522, 0, %v535
        %537 = vst [vmem:[#allocation3 + $0x38] sm:$0x1] %v536
        %v538 = vld [vmem:[#allocation3 + $0x44] sm:$0x1]
        %v539 = vsel %vm522, 0, %v538
        %540 = vst [vmem:[#allocation3 + $0x44] sm:$0x1] %v539
        %p541 = scmp.eq.s32.totalorder %s29, 0
        // Predicated region
        $region167: #{tpu_custom_call.1} parent=55 // pred_check
          %p542 = pneg %p541
        $region168: #{tpu_custom_call.1} parent=55 // pred_check_branch
          %544 = sbr.rel (%p542) target = $region170
        $region169: #{tpu_custom_call.1} parent=55 // pred_region
          %vm545 = vcmask 519168
          %546 = vst.msk [vmem:[#allocation3] sm:$0xf] %vm545, 0
          %547 = vst.msk [vmem:[#allocation3 + $0x4] sm:$0xf] %vm545, 0
          %vm548 = vcmask 516096
          %549 = vst.msk [vmem:[#allocation3 + $0x8] sm:$0x1] %vm548, 0
        $region170: #{tpu_custom_call.1} parent=55 // pred_fallthru
          _
        %p550 = scmp.eq.s32.totalorder %s29, 1
        // Predicated region
        $region171: #{tpu_custom_call.1} parent=55 // pred_check
          %p551 = pneg %p550
        $region172: #{tpu_custom_call.1} parent=55 // pred_check_branch
          %553 = sbr.rel (%p551) target = $region174
        $region173: #{tpu_custom_call.1} parent=55 // pred_region
          %s554 = scalar_lea.vmem [#allocation3], 60
          %vm555 = vcmask 519168
          %556 = vst.msk [vmem:[%s554] sm:$0xf] %vm555, 0
          %557 = vst.msk [vmem:[%s554 + $0x4] sm:$0xf] %vm555, 0
          %vm558 = vcmask 516096
          %559 = vst.msk [vmem:[%s554 + $0x8] sm:$0x1] %vm558, 0
        $region174: #{tpu_custom_call.1} parent=55 // pred_fallthru
          _
        %v560 = vld [vmem:[%s1] sm:$0xf]
        %v561 = vld [vmem:[%s1 + $0x4] sm:$0xf]
        %v562 = vld [vmem:[%s1 + $0x8] sm:$0xf]
        %v563 = vld [vmem:[%s1 + $0xc] sm:$0xf]
        %v564 = vld [vmem:[%s1 + $0x10] sm:$0xf]
        %v565 = vld [vmem:[%s1 + $0x14] sm:$0xf]
        %v566 = vld [vmem:[%s1 + $0x18] sm:$0xf]
        %v567 = vld [vmem:[%s1 + $0x1c] sm:$0xf]
        %v568 = vld [vmem:[%s1 + $0x20] sm:$0xf]
        %v569 = vld [vmem:[%s1 + $0x24] sm:$0xf]
        %v570 = vld [vmem:[%s1 + $0x28] sm:$0xf]
        %v571 = vld [vmem:[%s1 + $0x2c] sm:$0xf]
        %v572 = vld [vmem:[%s1 + $0x30] sm:$0xf]
        %v573 = vld [vmem:[%s1 + $0x34] sm:$0xf]
        %v574 = vld [vmem:[%s1 + $0x38] sm:$0xf]
        %v575 = vld [vmem:[%s1 + $0x3c] sm:$0xf]
        %v576 = vld [vmem:[%s4] sm:$0x1]
        %v577 = vld [vmem:[%s5] sm:$0x1]
        %s578 = smul.u32 4, 16
        %s579 = smul.u32 %s578, 1
        %s580 = sshll.u32 %s579, 4
        %581 = dma.done %s334, %s580
        %v582 = vld [vmem:[%s333] sm:$0xff]
        %v583 = vld [vmem:[%s333 + $0x8] sm:$0xff]
        %v584 = vld [vmem:[%s333 + $0x10] sm:$0xff]
        %v585 = vld [vmem:[%s333 + $0x18] sm:$0xff]
        %v586 = vld [vmem:[%s333 + $0x20] sm:$0xff]
        %v587 = vld [vmem:[%s333 + $0x28] sm:$0xff]
        %v588 = vld [vmem:[%s333 + $0x30] sm:$0xff]
        %v589 = vld [vmem:[%s333 + $0x38] sm:$0xff]
        %v590 = vpack.c.bf16 %v583, %v582
        %v591 = vpack.c.bf16 %v585, %v584
        %v592 = vpack.c.bf16 %v587, %v586
        %v593 = vpack.c.bf16 %v589, %v588
        %v610 = vunpack.c.l.b16 %v560
        %v611 = vunpack.c.l.b16 %v561
        %v612 = vunpack.c.l.b16 %v562
        %v613 = vunpack.c.l.b16 %v563
        %v614 = vunpack.c.l.b16 %v564
        %v615 = vunpack.c.l.b16 %v565
        %v616 = vunpack.c.l.b16 %v566
        %v617 = vunpack.c.l.b16 %v567
        %v618 = vunpack.c.l.b16 %v568
        %v619 = vunpack.c.l.b16 %v569
        %v620 = vunpack.c.l.b16 %v570
        %v621 = vunpack.c.l.b16 %v571
        %v622 = vunpack.c.l.b16 %v572
        %v623 = vunpack.c.l.b16 %v573
        %v624 = vunpack.c.l.b16 %v574
        %v625 = vunpack.c.l.b16 %v575
        %v626 = vpack.c.b16 %v611, %v610
        %v627 = vpack.c.b16 %v613, %v612
        %v628 = vpack.c.b16 %v615, %v614
        %v629 = vpack.c.b16 %v617, %v616
        %v630 = vpack.c.b16 %v619, %v618
        %v631 = vpack.c.b16 %v621, %v620
        %v632 = vpack.c.b16 %v623, %v622
        %v633 = vpack.c.b16 %v625, %v624
        %642 = vmatprep.subr.bf16.mxu0 0
        %643 = vmatpush1.bf16.msra.mxu0 %v633
        %644 = vmatprep.subr.bf16.mxu0 0
        %645 = vmatpush1.bf16.msra.mxu0 %v632
        %646 = vmatprep.subr.bf16.mxu0 0
        %647 = vmatpush1.bf16.msra.mxu0 %v631
        %648 = vmatprep.subr.bf16.mxu0 0
        %649 = vmatpush1.bf16.msra.mxu0 %v630
        %650 = vmatprep.subr.bf16.mxu0 0
        %651 = vmatpush1.bf16.msra.mxu0 %v629
        %652 = vmatprep.subr.bf16.mxu0 0
        %653 = vmatpush1.bf16.msra.mxu0 %v628
        %654 = vmatprep.subr.bf16.mxu0 0
        %655 = vmatpush1.bf16.msra.mxu0 %v627
        %656 = vmatprep.subr.bf16.mxu0 0
        %657 = vmatpush1.bf16.msra.mxu0 %v626
        %658 = vmatprep.subr.bf16.mxu0 0
        %659 = vmatpush2.bf16.msra.mxu0 0
        %660 = vmatprep.subr.bf16.mxu0 0
        %661 = vmatpush2.bf16.msra.mxu0 0
        %662 = vmatprep.subr.bf16.mxu0 0
        %663 = vmatpush2.bf16.msra.mxu0 0
        %664 = vmatprep.subr.bf16.mxu0 0
        %665 = vmatpush2.bf16.msra.mxu0 0
        %666 = vmatprep.subr.bf16.mxu0 0
        %667 = vmatpush2.bf16.msra.mxu0 0
        %668 = vmatprep.subr.bf16.mxu0 0
        %669 = vmatpush2.bf16.msra.mxu0 0
        %670 = vmatprep.subr.bf16.mxu0 0
        %671 = vmatpush2.bf16.msra.mxu0 0
        %672 = vmatprep.subr.bf16.mxu0 0
        %673 = vmatpush2.bf16.msra.mxu0 0
        %674 = vmatprep.mubr.bf16.mxu0 0
        %675 = vmatmul.mubr.bf16.gmra.mxu0 %v590
        %v676 = vpop.f32.mrf.mxu0
        %v677 = vadd.f32 0.0, %v676
        %v678 = vpop.f32.mrf.mxu0
        %v679 = vpop.f32.mrf.mxu0
        %v680 = vadd.f32 0.0, %v679
        %v681 = vpop.f32.mrf.mxu0
        %682 = vmatprep.mubr.bf16.mxu0 0
        %683 = vmatmul.mubr.bf16.gmra.mxu0 %v591
        %v684 = vpop.f32.mrf.mxu0
        %v685 = vadd.f32 0.0, %v684
        %v686 = vpop.f32.mrf.mxu0
        %v687 = vpop.f32.mrf.mxu0
        %v688 = vadd.f32 0.0, %v687
        %v689 = vpop.f32.mrf.mxu0
        %690 = vmatprep.mubr.bf16.mxu0 0
        %691 = vmatmul.mubr.bf16.gmra.mxu0 %v592
        %v692 = vpop.f32.mrf.mxu0
        %v693 = vadd.f32 0.0, %v692
        %v694 = vpop.f32.mrf.mxu0
        %v695 = vpop.f32.mrf.mxu0
        %v696 = vadd.f32 0.0, %v695
        %v697 = vpop.f32.mrf.mxu0
        %698 = vmatprep.mubr.bf16.mxu0 0
        %699 = vmatmul.mubr.bf16.gmra.mxu0 %v593
        %v700 = vpop.f32.mrf.mxu0
        %v701 = vadd.f32 0.0, %v700
        %v702 = vpop.f32.mrf.mxu0
        %v703 = vpop.f32.mrf.mxu0
        %v704 = vadd.f32 0.0, %v703
        %v705 = vpop.f32.mrf.mxu0
        %706 = vdwg.mxu0
        %v708 = vlaneseq
        %v709 = vshrl.u32 %v708, 7
        %v710 = vsub.s32 0, %v709
        %v711 = vrot.slane %v576, %v710
        %v713 = vmul.f32 %v677, %v711
        %v714 = vmul.f32 %v680, %v711
        %v715 = vmul.f32 %v685, %v711
        %v716 = vmul.f32 %v688, %v711
        %v717 = vmul.f32 %v693, %v711
        %v718 = vmul.f32 %v696, %v711
        %v719 = vmul.f32 %v701, %v711
        %v720 = vmul.f32 %v704, %v711
        %v722 = vlaneseq
        %v723 = vshrl.u32 %v722, 7
        %v724 = vsub.s32 0, %v723
        %v725 = vrot.slane %v577, %v724
        %v727 = vadd.f32 %v713, %v725
        %v728 = vadd.f32 %v714, %v725
        %v729 = vadd.f32 %v715, %v725
        %v730 = vadd.f32 %v716, %v725
        %v731 = vadd.f32 %v717, %v725
        %v732 = vadd.f32 %v718, %v725
        %v733 = vadd.f32 %v719, %v725
        %v734 = vadd.f32 %v720, %v725
        %v735 = vmax.f32 %v727, 0.0
        %v736 = vmax.f32 %v728, 0.0
        %v737 = vmax.f32 %v729, 0.0
        %v738 = vmax.f32 %v730, 0.0
        %v739 = vmax.f32 %v731, 0.0
        %v740 = vmax.f32 %v732, 0.0
        %v741 = vmax.f32 %v733, 0.0
        %v742 = vmax.f32 %v734, 0.0
        %v743 = vpack.c.bf16 %v736, %v735
        %v744 = vpack.c.bf16 %v738, %v737
        %v745 = vpack.c.bf16 %v740, %v739
        %v746 = vpack.c.bf16 %v742, %v741
        %v751 = vunpack.c.l.b16 %v743
        %v752 = vunpack.c.h.b16 %v743
        %v753 = vunpack.c.l.b16 %v744
        %v754 = vunpack.c.h.b16 %v744
        %v755 = vunpack.c.l.b16 %v745
        %v756 = vunpack.c.h.b16 %v745
        %v757 = vunpack.c.l.b16 %v746
        %v758 = vunpack.c.h.b16 %v746
        %v759 = vpack.c.b16 %v751, %v751
        %v760 = vpack.c.b16 %v752, %v752
        %v761 = vpack.c.b16 %v753, %v753
        %v762 = vpack.c.b16 %v754, %v754
        %v763 = vpack.c.b16 %v755, %v755
        %v764 = vpack.c.b16 %v756, %v756
        %v765 = vpack.c.b16 %v757, %v757
        %v766 = vpack.c.b16 %v758, %v758
        %vm767 = vsmask.f32 4368
        %vm768 = vmor %vm501, %vm767
        %v770 = vshrl.u32 %v759, 16
        %v772 = vrot.slane %v770, 7
        %v773 = vshll.u32 %v759, 16
        %v775 = vor.u32 %v772, %v773
        %v776 = vrot.slane %v772, 4
        %v778 = vshrl.u32 %v760, 16
        %v780 = vrot.slane %v778, 7
        %v781 = vshll.u32 %v760, 16
        %v783 = vor.u32 %v780, %v781
        %v784 = vsel %vm768, %v776, %v783
        %v785 = vrot.slane %v780, 4
        %v787 = vshrl.u32 %v761, 16
        %v789 = vrot.slane %v787, 7
        %v790 = vshll.u32 %v761, 16
        %v792 = vor.u32 %v789, %v790
        %v793 = vrot.slane %v789, 4
        %v795 = vshrl.u32 %v762, 16
        %v797 = vrot.slane %v795, 7
        %v798 = vshll.u32 %v762, 16
        %v800 = vor.u32 %v797, %v798
        %v801 = vsel %vm768, %v793, %v800
        %v802 = vrot.slane %v797, 4
        %v804 = vshrl.u32 %v763, 16
        %v806 = vrot.slane %v804, 7
        %v807 = vshll.u32 %v763, 16
        %v809 = vor.u32 %v806, %v807
        %v810 = vrot.slane %v806, 4
        %v812 = vshrl.u32 %v764, 16
        %v814 = vrot.slane %v812, 7
        %v815 = vshll.u32 %v764, 16
        %v817 = vor.u32 %v814, %v815
        %v818 = vsel %vm768, %v810, %v817
        %v819 = vrot.slane %v814, 4
        %v821 = vshrl.u32 %v765, 16
        %v823 = vrot.slane %v821, 7
        %v824 = vshll.u32 %v765, 16
        %v826 = vor.u32 %v823, %v824
        %v827 = vrot.slane %v823, 4
        %v829 = vshrl.u32 %v766, 16
        %v831 = vrot.slane %v829, 7
        %v832 = vshll.u32 %v766, 16
        %v834 = vor.u32 %v831, %v832
        %v835 = vsel %vm768, %v827, %v834
        %v836 = vrot.slane %v831, 4
        %s849 = scalar_lea.vmem [#allocation3], 12
        %vm850 = vcmask 519168
        %vm851 = vmand %vm850, %vm521
        %v852 = vld [vmem:[%s849] sm:$0xf]
        %v853 = vsel %vm851, %v775, %v852
        %854 = vst [vmem:[%s849] sm:$0xf] %v853
        %vm855 = vcmask 519168
        %856 = vst.msk [vmem:[%s849 + $0x4] sm:$0xf] %vm855, %v784
        %v857 = vld [vmem:[%s849 + $0x8] sm:$0x1]
        %v858 = vsel %vm502, %v785, %v857
        %859 = vst [vmem:[%s849 + $0x8] sm:$0x1] %v858
        %v860 = vld [vmem:[%s849 + $0xc] sm:$0xf]
        %v861 = vsel %vm851, %v792, %v860
        %862 = vst [vmem:[%s849 + $0xc] sm:$0xf] %v861
        %863 = vst.msk [vmem:[%s849 + $0x10] sm:$0xf] %vm855, %v801
        %v864 = vld [vmem:[%s849 + $0x14] sm:$0x1]
        %v865 = vsel %vm502, %v802, %v864
        %866 = vst [vmem:[%s849 + $0x14] sm:$0x1] %v865
        %v867 = vld [vmem:[%s849 + $0x18] sm:$0xf]
        %v868 = vsel %vm851, %v809, %v867
        %869 = vst [vmem:[%s849 + $0x18] sm:$0xf] %v868
        %870 = vst.msk [vmem:[%s849 + $0x1c] sm:$0xf] %vm855, %v818
        %v871 = vld [vmem:[%s849 + $0x20] sm:$0x1]
        %v872 = vsel %vm502, %v819, %v871
        %873 = vst [vmem:[%s849 + $0x20] sm:$0x1] %v872
        %v874 = vld [vmem:[%s849 + $0x24] sm:$0xf]
        %v875 = vsel %vm851, %v826, %v874
        %876 = vst [vmem:[%s849 + $0x24] sm:$0xf] %v875
        %877 = vst.msk [vmem:[%s849 + $0x28] sm:$0xf] %vm855, %v835
        %v878 = vld [vmem:[%s849 + $0x2c] sm:$0x1]
        %v879 = vsel %vm502, %v836, %v878
        %880 = vst [vmem:[%s849 + $0x2c] sm:$0x1] %v879
        // Predicated region
        $region175: #{tpu_custom_call.1} parent=55 // pred_check
          %p881 = pneg %p392
        $region176: #{tpu_custom_call.1} parent=55 // pred_check_branch
          %883 = sbr.rel (%p881) target = $region178
        $region177: #{tpu_custom_call.1} parent=55 // pred_region
          %s884 = smul.u32 16, 1
          %s885 = sshll.u32 %s884, 4
          %886 = dma.done [#allocation4], %s885
          %v887 = vld [vmem:[#allocation2] sm:$0xff]
          %v888 = vld [vmem:[#allocation2 + $0x8] sm:$0xff]
          %v889 = vpack.c.bf16 %v888, %v887
          %890 = vmatprep.subr.bf16.mxu0 0
          %891 = vmatpush1.bf16.msra.mxu0 %v633
          %892 = vmatprep.subr.bf16.mxu0 0
          %893 = vmatpush1.bf16.msra.mxu0 %v632
          %894 = vmatprep.subr.bf16.mxu0 0
          %895 = vmatpush1.bf16.msra.mxu0 %v631
          %896 = vmatprep.subr.bf16.mxu0 0
          %897 = vmatpush1.bf16.msra.mxu0 %v630
          %898 = vmatprep.subr.bf16.mxu0 0
          %899 = vmatpush1.bf16.msra.mxu0 %v629
          %900 = vmatprep.subr.bf16.mxu0 0
          %901 = vmatpush1.bf16.msra.mxu0 %v628
          %902 = vmatprep.subr.bf16.mxu0 0
          %903 = vmatpush1.bf16.msra.mxu0 %v627
          %904 = vmatprep.subr.bf16.mxu0 0
          %905 = vmatpush1.bf16.msra.mxu0 %v626
          %906 = vmatprep.subr.bf16.mxu0 0
          %907 = vmatpush2.bf16.msra.mxu0 0
          %908 = vmatprep.subr.bf16.mxu0 0
          %909 = vmatpush2.bf16.msra.mxu0 0
          %910 = vmatprep.subr.bf16.mxu0 0
          %911 = vmatpush2.bf16.msra.mxu0 0
          %912 = vmatprep.subr.bf16.mxu0 0
          %913 = vmatpush2.bf16.msra.mxu0 0
          %914 = vmatprep.subr.bf16.mxu0 0
          %915 = vmatpush2.bf16.msra.mxu0 0
          %916 = vmatprep.subr.bf16.mxu0 0
          %917 = vmatpush2.bf16.msra.mxu0 0
          %918 = vmatprep.subr.bf16.mxu0 0
          %919 = vmatpush2.bf16.msra.mxu0 0
          %920 = vmatprep.subr.bf16.mxu0 0
          %921 = vmatpush2.bf16.msra.mxu0 0
          %922 = vmatprep.mubr.bf16.mxu0 0
          %923 = vmatmul.mubr.bf16.gmra.mxu0 %v889
          %v924 = vpop.f32.mrf.mxu0
          %v925 = vadd.f32 0.0, %v924
          %v926 = vpop.f32.mrf.mxu0
          %v927 = vpop.f32.mrf.mxu0
          %v928 = vadd.f32 0.0, %v927
          %v929 = vpop.f32.mrf.mxu0
          %930 = vdwg.mxu0
          %v931 = vmul.f32 %v925, %v711
          %v932 = vmul.f32 %v928, %v711
          %v933 = vadd.f32 %v931, %v725
          %v934 = vadd.f32 %v932, %v725
          %v935 = vmax.f32 %v933, 0.0
          %v936 = vmax.f32 %v934, 0.0
          %v937 = vpack.c.bf16 %v936, %v935
          %v939 = vunpack.c.l.b16 %v937
          %v940 = vunpack.c.h.b16 %v937
          %v941 = vpack.c.b16 %v939, %v939
          %v942 = vpack.c.b16 %v940, %v940
          %v944 = vshrl.u32 %v941, 16
          %v946 = vrot.slane %v944, 7
          %v947 = vshll.u32 %v941, 16
          %v949 = vor.u32 %v946, %v947
          %v950 = vrot.slane %v946, 4
          %v952 = vshrl.u32 %v942, 16
          %v954 = vrot.slane %v952, 7
          %v955 = vshll.u32 %v942, 16
          %v957 = vor.u32 %v954, %v955
          %v958 = vsel %vm768, %v950, %v957
          %v959 = vrot.slane %v954, 4
          %v963 = vld [vmem:[#allocation3] sm:$0xf]
          %v964 = vsel %vm851, %v949, %v963
          %965 = vst [vmem:[#allocation3] sm:$0xf] %v964
          %966 = vst.msk [vmem:[#allocation3 + $0x4] sm:$0xf] %vm855, %v958
          %v967 = vld [vmem:[#allocation3 + $0x8] sm:$0x1]
          %v968 = vsel %vm502, %v959, %v967
          %969 = vst [vmem:[#allocation3 + $0x8] sm:$0x1] %v968
        $region178: #{tpu_custom_call.1} parent=55 // pred_fallthru
          _
        // Predicated region
        $region179: #{tpu_custom_call.1} parent=55 // pred_check
          %p970 = pneg %p445
        $region180: #{tpu_custom_call.1} parent=55 // pred_check_branch
          %972 = sbr.rel (%p970) target = $region182
        $region181: #{tpu_custom_call.1} parent=55 // pred_region
          %s973 = scalar_lea.vmem [#allocation2], 80
          %s974 = scalar_lea.sflag [#allocation4], 2
          %s975 = smul.u32 16, 1
          %s976 = sshll.u32 %s975, 4
          %977 = dma.done %s974, %s976
          %v978 = vld [vmem:[%s973] sm:$0xff]
          %v979 = vld [vmem:[%s973 + $0x8] sm:$0xff]
          %v980 = vpack.c.bf16 %v979, %v978
          %981 = vmatprep.subr.bf16.mxu0 0
          %982 = vmatpush1.bf16.msra.mxu0 %v633
          %983 = vmatprep.subr.bf16.mxu0 0
          %984 = vmatpush1.bf16.msra.mxu0 %v632
          %985 = vmatprep.subr.bf16.mxu0 0
          %986 = vmatpush1.bf16.msra.mxu0 %v631
          %987 = vmatprep.subr.bf16.mxu0 0
          %988 = vmatpush1.bf16.msra.mxu0 %v630
          %989 = vmatprep.subr.bf16.mxu0 0
          %990 = vmatpush1.bf16.msra.mxu0 %v629
          %991 = vmatprep.subr.bf16.mxu0 0
          %992 = vmatpush1.bf16.msra.mxu0 %v628
          %993 = vmatprep.subr.bf16.mxu0 0
          %994 = vmatpush1.bf16.msra.mxu0 %v627
          %995 = vmatprep.subr.bf16.mxu0 0
          %996 = vmatpush1.bf16.msra.mxu0 %v626
          %997 = vmatprep.subr.bf16.mxu0 0
          %998 = vmatpush2.bf16.msra.mxu0 0
          %999 = vmatprep.subr.bf16.mxu0 0
          %1000 = vmatpush2.bf16.msra.mxu0 0
          %1001 = vmatprep.subr.bf16.mxu0 0
          %1002 = vmatpush2.bf16.msra.mxu0 0
          %1003 = vmatprep.subr.bf16.mxu0 0
          %1004 = vmatpush2.bf16.msra.mxu0 0
          %1005 = vmatprep.subr.bf16.mxu0 0
          %1006 = vmatpush2.bf16.msra.mxu0 0
          %1007 = vmatprep.subr.bf16.mxu0 0
          %1008 = vmatpush2.bf16.msra.mxu0 0
          %1009 = vmatprep.subr.bf16.mxu0 0
          %1010 = vmatpush2.bf16.msra.mxu0 0
          %1011 = vmatprep.subr.bf16.mxu0 0
          %1012 = vmatpush2.bf16.msra.mxu0 0
          %1013 = vmatprep.mubr.bf16.mxu0 0
          %1014 = vmatmul.mubr.bf16.gmra.mxu0 %v980
          %v1015 = vpop.f32.mrf.mxu0
          %v1016 = vadd.f32 0.0, %v1015
          %v1017 = vpop.f32.mrf.mxu0
          %v1018 = vpop.f32.mrf.mxu0
          %v1019 = vadd.f32 0.0, %v1018
          %v1020 = vpop.f32.mrf.mxu0
          %1021 = vdwg.mxu0
          %v1022 = vmul.f32 %v1016, %v711
          %v1023 = vmul.f32 %v1019, %v711
          %v1024 = vadd.f32 %v1022, %v725
          %v1025 = vadd.f32 %v1023, %v725
          %v1026 = vmax.f32 %v1024, 0.0
          %v1027 = vmax.f32 %v1025, 0.0
          %v1028 = vpack.c.bf16 %v1027, %v1026
          %v1030 = vunpack.c.l.b16 %v1028
          %v1031 = vunpack.c.h.b16 %v1028
          %v1032 = vpack.c.b16 %v1030, %v1030
          %v1033 = vpack.c.b16 %v1031, %v1031
          %v1035 = vshrl.u32 %v1032, 16
          %v1037 = vrot.slane %v1035, 7
          %v1038 = vshll.u32 %v1032, 16
          %v1040 = vor.u32 %v1037, %v1038
          %v1041 = vrot.slane %v1037, 4
          %v1043 = vshrl.u32 %v1033, 16
          %v1045 = vrot.slane %v1043, 7
          %v1046 = vshll.u32 %v1033, 16
          %v1048 = vor.u32 %v1045, %v1046
          %v1049 = vsel %vm768, %v1041, %v1048
          %v1050 = vrot.slane %v1045, 4
          %s1054 = scalar_lea.vmem [#allocation3], 60
          %v1055 = vld [vmem:[%s1054] sm:$0xf]
          %v1056 = vsel %vm851, %v1040, %v1055
          %1057 = vst [vmem:[%s1054] sm:$0xf] %v1056
          %1058 = vst.msk [vmem:[%s1054 + $0x4] sm:$0xf] %vm855, %v1049
          %v1059 = vld [vmem:[%s1054 + $0x8] sm:$0x1]
          %v1060 = vsel %vm502, %v1050, %v1059
          %1061 = vst [vmem:[%s1054 + $0x8] sm:$0x1] %v1060
        $region182: #{tpu_custom_call.1} parent=55 // pred_fallthru
          _
        %v1062 = vld [vmem:[%s2] sm:$0xf]
        %v1063 = vld [vmem:[%s2 + $0x4] sm:$0xf]
        %v1064 = vld [vmem:[%s2 + $0x8] sm:$0xf]
        %v1065 = vld [vmem:[%s2 + $0xc] sm:$0xf]
        %v1066 = vld [vmem:[%s2 + $0x10] sm:$0xf]
        %v1067 = vld [vmem:[%s2 + $0x14] sm:$0xf]
        %v1068 = vld [vmem:[%s2 + $0x18] sm:$0xf]
        %v1069 = vld [vmem:[%s2 + $0x1c] sm:$0xf]
        %v1070 = vld [vmem:[%s2 + $0x20] sm:$0xf]
        %v1071 = vld [vmem:[%s2 + $0x24] sm:$0xf]
        %v1072 = vld [vmem:[%s2 + $0x28] sm:$0xf]
        %v1073 = vld [vmem:[%s2 + $0x2c] sm:$0xf]
        %v1074 = vld [vmem:[%s2 + $0x30] sm:$0xf]
        %v1075 = vld [vmem:[%s2 + $0x34] sm:$0xf]
        %v1076 = vld [vmem:[%s2 + $0x38] sm:$0xf]
        %v1077 = vld [vmem:[%s2 + $0x3c] sm:$0xf]
        %v1078 = vld [vmem:[%s2 + $0x40] sm:$0xf]
        %v1079 = vld [vmem:[%s2 + $0x44] sm:$0xf]
        %v1080 = vld [vmem:[%s2 + $0x48] sm:$0xf]
        %v1081 = vld [vmem:[%s2 + $0x4c] sm:$0xf]
        %v1082 = vld [vmem:[%s2 + $0x50] sm:$0xf]
        %v1083 = vld [vmem:[%s2 + $0x54] sm:$0xf]
        %v1084 = vld [vmem:[%s2 + $0x58] sm:$0xf]
        %v1085 = vld [vmem:[%s2 + $0x5c] sm:$0xf]
        %v1086 = vld [vmem:[%s2 + $0x60] sm:$0xf]
        %v1087 = vld [vmem:[%s2 + $0x64] sm:$0xf]
        %v1088 = vld [vmem:[%s2 + $0x68] sm:$0xf]
        %v1089 = vld [vmem:[%s2 + $0x6c] sm:$0xf]
        %v1090 = vld [vmem:[%s2 + $0x70] sm:$0xf]
        %v1091 = vld [vmem:[%s2 + $0x74] sm:$0xf]
        %v1092 = vld [vmem:[%s2 + $0x78] sm:$0xf]
        %v1093 = vld [vmem:[%s2 + $0x7c] sm:$0xf]
        %v1094 = vld [vmem:[%s2 + $0x80] sm:$0xf]
        %v1095 = vld [vmem:[%s2 + $0x84] sm:$0xf]
        %v1096 = vld [vmem:[%s2 + $0x88] sm:$0xf]
        %v1097 = vld [vmem:[%s2 + $0x8c] sm:$0xf]
        %v1098 = vld [vmem:[%s2 + $0x90] sm:$0xf]
        %v1099 = vld [vmem:[%s2 + $0x94] sm:$0xf]
        %v1100 = vld [vmem:[%s2 + $0x98] sm:$0xf]
        %v1101 = vld [vmem:[%s2 + $0x9c] sm:$0xf]
        %v1102 = vld [vmem:[%s2 + $0xa0] sm:$0xf]
        %v1103 = vld [vmem:[%s2 + $0xa4] sm:$0xf]
        %v1104 = vld [vmem:[%s2 + $0xa8] sm:$0xf]
        %v1105 = vld [vmem:[%s2 + $0xac] sm:$0xf]
        %v1106 = vld [vmem:[%s2 + $0xb0] sm:$0xf]
        %v1107 = vld [vmem:[%s2 + $0xb4] sm:$0xf]
        %v1108 = vld [vmem:[%s2 + $0xb8] sm:$0xf]
        %v1109 = vld [vmem:[%s2 + $0xbc] sm:$0xf]
        %v1110 = vld [vmem:[%s2 + $0xc0] sm:$0xf]
        %v1111 = vld [vmem:[%s2 + $0xc4] sm:$0xf]
        %v1112 = vld [vmem:[%s2 + $0xc8] sm:$0xf]
        %v1113 = vld [vmem:[%s2 + $0xcc] sm:$0xf]
        %v1114 = vld [vmem:[%s2 + $0xd0] sm:$0xf]
        %v1115 = vld [vmem:[%s2 + $0xd4] sm:$0xf]
        %v1116 = vld [vmem:[%s2 + $0xd8] sm:$0xf]
        %v1117 = vld [vmem:[%s2 + $0xdc] sm:$0xf]
        %v1118 = vld [vmem:[%s2 + $0xe0] sm:$0xf]
        %v1119 = vld [vmem:[%s2 + $0xe4] sm:$0xf]
        %v1120 = vld [vmem:[%s2 + $0xe8] sm:$0xf]
        %v1121 = vld [vmem:[%s2 + $0xec] sm:$0xf]
        %v1122 = vld [vmem:[%s2 + $0xf0] sm:$0xf]
        %v1123 = vld [vmem:[%s2 + $0xf4] sm:$0xf]
        %v1124 = vld [vmem:[%s2 + $0xf8] sm:$0xf]
        %v1125 = vld [vmem:[%s2 + $0xfc] sm:$0xf]
        %v1126 = vld [vmem:[%s2 + $0x100] sm:$0xf]
        %v1127 = vld [vmem:[%s2 + $0x104] sm:$0xf]
        %v1128 = vld [vmem:[%s2 + $0x108] sm:$0xf]
        %v1129 = vld [vmem:[%s2 + $0x10c] sm:$0xf]
        %v1130 = vld [vmem:[%s2 + $0x110] sm:$0xf]
        %v1131 = vld [vmem:[%s2 + $0x114] sm:$0xf]
        %v1132 = vld [vmem:[%s2 + $0x118] sm:$0xf]
        %v1133 = vld [vmem:[%s2 + $0x11c] sm:$0xf]
        %v1134 = vld [vmem:[#allocation3] sm:$0xf]
        %v1135 = vld [vmem:[#allocation3 + $0x4] sm:$0xf]
        %v1136 = vld [vmem:[#allocation3 + $0xc] sm:$0xf]
        %v1137 = vld [vmem:[#allocation3 + $0x10] sm:$0xf]
        %v1138 = vld [vmem:[#allocation3 + $0x18] sm:$0xf]
        %v1139 = vld [vmem:[#allocation3 + $0x1c] sm:$0xf]
        %v1140 = vld [vmem:[#allocation3 + $0x24] sm:$0xf]
        %v1141 = vld [vmem:[#allocation3 + $0x28] sm:$0xf]
        %v1142 = vld [vmem:[#allocation3 + $0x8] sm:$0x1]
        %v1143 = vld [vmem:[#allocation3 + $0x14] sm:$0x1]
        %v1144 = vld [vmem:[#allocation3 + $0x20] sm:$0x1]
        %v1145 = vld [vmem:[#allocation3 + $0x2c] sm:$0x1]
        %vm1146 = vsmask.f32 3328
        %vm1147 = vsmask.f32 7440
        %vm1148 = vmor %vm1146, %vm1147
        %v1150 = vshrl.u32 %v1134, 16
        %v1152 = vrot.slane %v1150, 4
        %v1153 = vshll.u32 %v1134, 16
        %v1155 = vrot.slane %v1153, 5
        %v1156 = vor.u32 %v1152, %v1155
        %v1157 = vrot.slane %v1156, 4
        %v1159 = vshll.u32 %v1135, 16
        %v1161 = vrot.slane %v1159, 5
        %v1162 = vsel %vm1148, %v1157, %v1161
        %v1163 = vshrl.u32 %v1135, 16
        %v1165 = vrot.slane %v1163, 4
        %v1166 = vor.u32 %v1165, %v1161
        %v1167 = vrot.slane %v1166, 4
        %v1169 = vshll.u32 %v1142, 16
        %v1171 = vrot.slane %v1169, 5
        %v1172 = vsel %vm1148, %v1167, %v1171
        %v1174 = vshrl.u32 %v1136, 16
        %v1176 = vrot.slane %v1174, 4
        %v1177 = vshll.u32 %v1136, 16
        %v1179 = vrot.slane %v1177, 5
        %v1180 = vor.u32 %v1176, %v1179
        %v1181 = vrot.slane %v1180, 4
        %v1183 = vshll.u32 %v1137, 16
        %v1185 = vrot.slane %v1183, 5
        %v1186 = vsel %vm1148, %v1181, %v1185
        %v1187 = vshrl.u32 %v1137, 16
        %v1189 = vrot.slane %v1187, 4
        %v1190 = vor.u32 %v1189, %v1185
        %v1191 = vrot.slane %v1190, 4
        %v1193 = vshll.u32 %v1143, 16
        %v1195 = vrot.slane %v1193, 5
        %v1196 = vsel %vm1148, %v1191, %v1195
        %v1198 = vshrl.u32 %v1138, 16
        %v1200 = vrot.slane %v1198, 4
        %v1201 = vshll.u32 %v1138, 16
        %v1203 = vrot.slane %v1201, 5
        %v1204 = vor.u32 %v1200, %v1203
        %v1205 = vrot.slane %v1204, 4
        %v1207 = vshll.u32 %v1139, 16
        %v1209 = vrot.slane %v1207, 5
        %v1210 = vsel %vm1148, %v1205, %v1209
        %v1211 = vshrl.u32 %v1139, 16
        %v1213 = vrot.slane %v1211, 4
        %v1214 = vor.u32 %v1213, %v1209
        %v1215 = vrot.slane %v1214, 4
        %v1217 = vshll.u32 %v1144, 16
        %v1219 = vrot.slane %v1217, 5
        %v1220 = vsel %vm1148, %v1215, %v1219
        %v1222 = vshrl.u32 %v1140, 16
        %v1224 = vrot.slane %v1222, 4
        %v1225 = vshll.u32 %v1140, 16
        %v1227 = vrot.slane %v1225, 5
        %v1228 = vor.u32 %v1224, %v1227
        %v1229 = vrot.slane %v1228, 4
        %v1231 = vshll.u32 %v1141, 16
        %v1233 = vrot.slane %v1231, 5
        %v1234 = vsel %vm1148, %v1229, %v1233
        %v1235 = vshrl.u32 %v1141, 16
        %v1237 = vrot.slane %v1235, 4
        %v1238 = vor.u32 %v1237, %v1233
        %v1239 = vrot.slane %v1238, 4
        %v1241 = vshll.u32 %v1145, 16
        %v1243 = vrot.slane %v1241, 5
        %v1244 = vsel %vm1148, %v1239, %v1243
        %v1245 = vld [vmem:[#allocation3] sm:$0xe]
        %v1246 = vld [vmem:[#allocation3 + $0xc] sm:$0xe]
        %v1247 = vld [vmem:[#allocation3 + $0x18] sm:$0xe]
        %v1248 = vld [vmem:[#allocation3 + $0x24] sm:$0xe]
        %vm1261 = vcmask 1042432
        %vm1262 = vcmask 1046532
        %vm1263 = vmor %vm1261, %vm1262
        %v1264 = vrot.slane %v1245, 5
        %v1265 = vrot.slane %v1264, 4
        %v1266 = vrot.slane %v1135, 5
        %v1267 = vsel %vm1263, %v1265, %v1266
        %v1268 = vrot.slane %v1266, 4
        %v1269 = vrot.slane %v1142, 5
        %v1270 = vsel %vm1263, %v1268, %v1269
        %v1271 = vrot.slane %v1246, 5
        %v1272 = vrot.slane %v1271, 4
        %v1273 = vrot.slane %v1137, 5
        %v1274 = vsel %vm1263, %v1272, %v1273
        %v1275 = vrot.slane %v1273, 4
        %v1276 = vrot.slane %v1143, 5
        %v1277 = vsel %vm1263, %v1275, %v1276
        %v1278 = vrot.slane %v1247, 5
        %v1279 = vrot.slane %v1278, 4
        %v1280 = vrot.slane %v1139, 5
        %v1281 = vsel %vm1263, %v1279, %v1280
        %v1282 = vrot.slane %v1280, 4
        %v1283 = vrot.slane %v1144, 5
        %v1284 = vsel %vm1263, %v1282, %v1283
        %v1285 = vrot.slane %v1248, 5
        %v1286 = vrot.slane %v1285, 4
        %v1287 = vrot.slane %v1141, 5
        %v1288 = vsel %vm1263, %v1286, %v1287
        %v1289 = vrot.slane %v1287, 4
        %v1290 = vrot.slane %v1145, 5
        %v1291 = vsel %vm1263, %v1289, %v1290
        %v1296 = vunpack.c.l.b16 %v1134
        %v1297 = vunpack.c.l.b16 %v1135
        %v1298 = vunpack.c.l.b16 %v1136
        %v1299 = vunpack.c.l.b16 %v1137
        %v1300 = vunpack.c.l.b16 %v1138
        %v1301 = vunpack.c.l.b16 %v1139
        %v1302 = vunpack.c.l.b16 %v1140
        %v1303 = vunpack.c.l.b16 %v1141
        %v1304 = vpack.c.b16 %v1297, %v1296
        %v1305 = vpack.c.b16 %v1299, %v1298
        %v1306 = vpack.c.b16 %v1301, %v1300
        %v1307 = vpack.c.b16 %v1303, %v1302
        %v1308 = vunpack.c.l.b16 %v1162
        %v1309 = vunpack.c.l.b16 %v1172
        %v1310 = vunpack.c.l.b16 %v1186
        %v1311 = vunpack.c.l.b16 %v1196
        %v1312 = vunpack.c.l.b16 %v1210
        %v1313 = vunpack.c.l.b16 %v1220
        %v1314 = vunpack.c.l.b16 %v1234
        %v1315 = vunpack.c.l.b16 %v1244
        %v1316 = vpack.c.b16 %v1309, %v1308
        %v1317 = vpack.c.b16 %v1311, %v1310
        %v1318 = vpack.c.b16 %v1313, %v1312
        %v1319 = vpack.c.b16 %v1315, %v1314
        %1320 = vrot.lane.b32.xlu0 %v1316, 64
        %v1321 = vpop.permute.xlu0 %1320
        %1322 = vrot.lane.b32.xlu0 %v1317, 64
        %v1323 = vpop.permute.xlu0 %1322
        %1324 = vrot.lane.b32.xlu0 %v1318, 64
        %v1325 = vpop.permute.xlu0 %1324
        %1326 = vrot.lane.b32.xlu0 %v1319, 64
        %v1327 = vpop.permute.xlu0 %1326
        %v1328 = vunpack.c.l.b16 %v1267
        %v1329 = vunpack.c.l.b16 %v1270
        %v1330 = vunpack.c.l.b16 %v1274
        %v1331 = vunpack.c.l.b16 %v1277
        %v1332 = vunpack.c.l.b16 %v1281
        %v1333 = vunpack.c.l.b16 %v1284
        %v1334 = vunpack.c.l.b16 %v1288
        %v1335 = vunpack.c.l.b16 %v1291
        %v1336 = vpack.c.b16 %v1329, %v1328
        %v1337 = vpack.c.b16 %v1331, %v1330
        %v1338 = vpack.c.b16 %v1333, %v1332
        %v1339 = vpack.c.b16 %v1335, %v1334
        %vm1340 = vcmask 523264
        %v1343 = vsel %vm1340, %v1304, %v1321
        %v1347 = vsel %vm1340, %v1305, %v1323
        %v1351 = vsel %vm1340, %v1306, %v1325
        %v1355 = vsel %vm1340, %v1307, %v1327
        %v1357 = vld [vmem:[%s849] sm:$0xf]
        %v1358 = vld [vmem:[%s849 + $0x4] sm:$0xf]
        %v1359 = vld [vmem:[%s849 + $0xc] sm:$0xf]
        %v1360 = vld [vmem:[%s849 + $0x10] sm:$0xf]
        %v1361 = vld [vmem:[%s849 + $0x18] sm:$0xf]
        %v1362 = vld [vmem:[%s849 + $0x1c] sm:$0xf]
        %v1363 = vld [vmem:[%s849 + $0x24] sm:$0xf]
        %v1364 = vld [vmem:[%s849 + $0x28] sm:$0xf]
        %v1365 = vld [vmem:[%s849 + $0x8] sm:$0x1]
        %v1366 = vld [vmem:[%s849 + $0x14] sm:$0x1]
        %v1367 = vld [vmem:[%s849 + $0x20] sm:$0x1]
        %v1368 = vld [vmem:[%s849 + $0x2c] sm:$0x1]
        %v1370 = vshrl.u32 %v1357, 16
        %v1372 = vrot.slane %v1370, 4
        %v1373 = vshll.u32 %v1357, 16
        %v1375 = vrot.slane %v1373, 5
        %v1376 = vor.u32 %v1372, %v1375
        %v1377 = vrot.slane %v1376, 4
        %v1379 = vshll.u32 %v1358, 16
        %v1381 = vrot.slane %v1379, 5
        %v1382 = vsel %vm1148, %v1377, %v1381
        %v1383 = vshrl.u32 %v1358, 16
        %v1385 = vrot.slane %v1383, 4
        %v1386 = vor.u32 %v1385, %v1381
        %v1387 = vrot.slane %v1386, 4
        %v1389 = vshll.u32 %v1365, 16
        %v1391 = vrot.slane %v1389, 5
        %v1392 = vsel %vm1148, %v1387, %v1391
        %v1394 = vshrl.u32 %v1359, 16
        %v1396 = vrot.slane %v1394, 4
        %v1397 = vshll.u32 %v1359, 16
        %v1399 = vrot.slane %v1397, 5
        %v1400 = vor.u32 %v1396, %v1399
        %v1401 = vrot.slane %v1400, 4
        %v1403 = vshll.u32 %v1360, 16
        %v1405 = vrot.slane %v1403, 5
        %v1406 = vsel %vm1148, %v1401, %v1405
        %v1407 = vshrl.u32 %v1360, 16
        %v1409 = vrot.slane %v1407, 4
        %v1410 = vor.u32 %v1409, %v1405
        %v1411 = vrot.slane %v1410, 4
        %v1413 = vshll.u32 %v1366, 16
        %v1415 = vrot.slane %v1413, 5
        %v1416 = vsel %vm1148, %v1411, %v1415
        %v1418 = vshrl.u32 %v1361, 16
        %v1420 = vrot.slane %v1418, 4
        %v1421 = vshll.u32 %v1361, 16
        %v1423 = vrot.slane %v1421, 5
        %v1424 = vor.u32 %v1420, %v1423
        %v1425 = vrot.slane %v1424, 4
        %v1427 = vshll.u32 %v1362, 16
        %v1429 = vrot.slane %v1427, 5
        %v1430 = vsel %vm1148, %v1425, %v1429
        %v1431 = vshrl.u32 %v1362, 16
        %v1433 = vrot.slane %v1431, 4
        %v1434 = vor.u32 %v1433, %v1429
        %v1435 = vrot.slane %v1434, 4
        %v1437 = vshll.u32 %v1367, 16
        %v1439 = vrot.slane %v1437, 5
        %v1440 = vsel %vm1148, %v1435, %v1439
        %v1442 = vshrl.u32 %v1363, 16
        %v1444 = vrot.slane %v1442, 4
        %v1445 = vshll.u32 %v1363, 16
        %v1447 = vrot.slane %v1445, 5
        %v1448 = vor.u32 %v1444, %v1447
        %v1449 = vrot.slane %v1448, 4
        %v1451 = vshll.u32 %v1364, 16
        %v1453 = vrot.slane %v1451, 5
        %v1454 = vsel %vm1148, %v1449, %v1453
        %v1455 = vshrl.u32 %v1364, 16
        %v1457 = vrot.slane %v1455, 4
        %v1458 = vor.u32 %v1457, %v1453
        %v1459 = vrot.slane %v1458, 4
        %v1461 = vshll.u32 %v1368, 16
        %v1463 = vrot.slane %v1461, 5
        %v1464 = vsel %vm1148, %v1459, %v1463
        %v1465 = vld [vmem:[%s849] sm:$0xe]
        %v1466 = vld [vmem:[%s849 + $0xc] sm:$0xe]
        %v1467 = vld [vmem:[%s849 + $0x18] sm:$0xe]
        %v1468 = vld [vmem:[%s849 + $0x24] sm:$0xe]
        %v1481 = vrot.slane %v1465, 5
        %v1482 = vrot.slane %v1481, 4
        %v1483 = vrot.slane %v1358, 5
        %v1484 = vsel %vm1263, %v1482, %v1483
        %v1485 = vrot.slane %v1483, 4
        %v1486 = vrot.slane %v1365, 5
        %v1487 = vsel %vm1263, %v1485, %v1486
        %v1488 = vrot.slane %v1466, 5
        %v1489 = vrot.slane %v1488, 4
        %v1490 = vrot.slane %v1360, 5
        %v1491 = vsel %vm1263, %v1489, %v1490
        %v1492 = vrot.slane %v1490, 4
        %v1493 = vrot.slane %v1366, 5
        %v1494 = vsel %vm1263, %v1492, %v1493
        %v1495 = vrot.slane %v1467, 5
        %v1496 = vrot.slane %v1495, 4
        %v1497 = vrot.slane %v1362, 5
        %v1498 = vsel %vm1263, %v1496, %v1497
        %v1499 = vrot.slane %v1497, 4
        %v1500 = vrot.slane %v1367, 5
        %v1501 = vsel %vm1263, %v1499, %v1500
        %v1502 = vrot.slane %v1468, 5
        %v1503 = vrot.slane %v1502, 4
        %v1504 = vrot.slane %v1364, 5
        %v1505 = vsel %vm1263, %v1503, %v1504
        %v1506 = vrot.slane %v1504, 4
        %v1507 = vrot.slane %v1368, 5
        %v1508 = vsel %vm1263, %v1506, %v1507
        %v1513 = vunpack.c.l.b16 %v1357
        %v1514 = vunpack.c.l.b16 %v1358
        %v1515 = vunpack.c.l.b16 %v1359
        %v1516 = vunpack.c.l.b16 %v1360
        %v1517 = vunpack.c.l.b16 %v1361
        %v1518 = vunpack.c.l.b16 %v1362
        %v1519 = vunpack.c.l.b16 %v1363
        %v1520 = vunpack.c.l.b16 %v1364
        %v1521 = vpack.c.b16 %v1514, %v1513
        %v1522 = vpack.c.b16 %v1516, %v1515
        %v1523 = vpack.c.b16 %v1518, %v1517
        %v1524 = vpack.c.b16 %v1520, %v1519
        %v1525 = vunpack.c.l.b16 %v1382
        %v1526 = vunpack.c.l.b16 %v1392
        %v1527 = vunpack.c.l.b16 %v1406
        %v1528 = vunpack.c.l.b16 %v1416
        %v1529 = vunpack.c.l.b16 %v1430
        %v1530 = vunpack.c.l.b16 %v1440
        %v1531 = vunpack.c.l.b16 %v1454
        %v1532 = vunpack.c.l.b16 %v1464
        %v1533 = vpack.c.b16 %v1526, %v1525
        %v1534 = vpack.c.b16 %v1528, %v1527
        %v1535 = vpack.c.b16 %v1530, %v1529
        %v1536 = vpack.c.b16 %v1532, %v1531
        %1537 = vrot.lane.b32.xlu0 %v1533, 64
        %v1538 = vpop.permute.xlu0 %1537
        %1539 = vrot.lane.b32.xlu0 %v1534, 64
        %v1540 = vpop.permute.xlu0 %1539
        %1541 = vrot.lane.b32.xlu0 %v1535, 64
        %v1542 = vpop.permute.xlu0 %1541
        %1543 = vrot.lane.b32.xlu0 %v1536, 64
        %v1544 = vpop.permute.xlu0 %1543
        %v1545 = vunpack.c.l.b16 %v1484
        %v1546 = vunpack.c.l.b16 %v1487
        %v1547 = vunpack.c.l.b16 %v1491
        %v1548 = vunpack.c.l.b16 %v1494
        %v1549 = vunpack.c.l.b16 %v1498
        %v1550 = vunpack.c.l.b16 %v1501
        %v1551 = vunpack.c.l.b16 %v1505
        %v1552 = vunpack.c.l.b16 %v1508
        %v1553 = vpack.c.b16 %v1546, %v1545
        %v1554 = vpack.c.b16 %v1548, %v1547
        %v1555 = vpack.c.b16 %v1550, %v1549
        %v1556 = vpack.c.b16 %v1552, %v1551
        %v1559 = vsel %vm1340, %v1521, %v1538
        %v1563 = vsel %vm1340, %v1522, %v1540
        %v1567 = vsel %vm1340, %v1523, %v1542
        %v1571 = vsel %vm1340, %v1524, %v1544
        %v1597 = vunpack.c.l.b16 %v1086
        %v1598 = vunpack.c.l.b16 %v1087
        %v1599 = vunpack.c.l.b16 %v1088
        %v1600 = vunpack.c.l.b16 %v1089
        %v1601 = vunpack.c.l.b16 %v1090
        %v1602 = vunpack.c.l.b16 %v1091
        %v1603 = vunpack.c.l.b16 %v1092
        %v1604 = vunpack.c.l.b16 %v1093
        %v1605 = vunpack.c.l.b16 %v1094
        %v1606 = vunpack.c.l.b16 %v1095
        %v1607 = vunpack.c.l.b16 %v1096
        %v1608 = vunpack.c.l.b16 %v1097
        %v1609 = vunpack.c.l.b16 %v1098
        %v1610 = vunpack.c.l.b16 %v1099
        %v1611 = vunpack.c.l.b16 %v1100
        %v1612 = vunpack.c.l.b16 %v1101
        %v1613 = vunpack.c.l.b16 %v1102
        %v1614 = vunpack.c.l.b16 %v1103
        %v1615 = vunpack.c.l.b16 %v1104
        %v1616 = vunpack.c.l.b16 %v1105
        %v1617 = vunpack.c.l.b16 %v1106
        %v1618 = vunpack.c.l.b16 %v1107
        %v1619 = vunpack.c.l.b16 %v1108
        %v1620 = vunpack.c.l.b16 %v1109
        %v1621 = vpack.c.b16 %v1598, %v1597
        %v1622 = vpack.c.b16 %v1600, %v1599
        %v1623 = vpack.c.b16 %v1602, %v1601
        %v1624 = vpack.c.b16 %v1604, %v1603
        %v1625 = vpack.c.b16 %v1606, %v1605
        %v1626 = vpack.c.b16 %v1608, %v1607
        %v1627 = vpack.c.b16 %v1610, %v1609
        %v1628 = vpack.c.b16 %v1612, %v1611
        %v1629 = vpack.c.b16 %v1614, %v1613
        %v1630 = vpack.c.b16 %v1616, %v1615
        %v1631 = vpack.c.b16 %v1618, %v1617
        %v1632 = vpack.c.b16 %v1620, %v1619
        %v1646 = vsel %vm1340, %v1553, 0
        %v1649 = vsel %vm1340, %v1554, 0
        %v1652 = vsel %vm1340, %v1555, 0
        %v1655 = vsel %vm1340, %v1556, 0
        %1657 = vmatprep.subr.bf16.mxu0 0
        %1658 = vmatpush1.bf16.msra.mxu0 %v1628
        %1659 = vmatprep.subr.bf16.mxu0 0
        %1660 = vmatpush1.bf16.msra.mxu0 %v1627
        %1661 = vmatprep.subr.bf16.mxu0 0
        %1662 = vmatpush1.bf16.msra.mxu0 %v1626
        %1663 = vmatprep.subr.bf16.mxu0 0
        %1664 = vmatpush1.bf16.msra.mxu0 %v1625
        %1665 = vmatprep.subr.bf16.mxu0 0
        %1666 = vmatpush1.bf16.msra.mxu0 %v1624
        %1667 = vmatprep.subr.bf16.mxu0 0
        %1668 = vmatpush1.bf16.msra.mxu0 %v1623
        %1669 = vmatprep.subr.bf16.mxu0 0
        %1670 = vmatpush1.bf16.msra.mxu0 %v1622
        %1671 = vmatprep.subr.bf16.mxu0 0
        %1672 = vmatpush1.bf16.msra.mxu0 %v1621
        %1673 = vmatprep.subr.bf16.mxu0 0
        %1674 = vmatpush2.bf16.msra.mxu0 0
        %1675 = vmatprep.subr.bf16.mxu0 0
        %1676 = vmatpush2.bf16.msra.mxu0 0
        %1677 = vmatprep.subr.bf16.mxu0 0
        %1678 = vmatpush2.bf16.msra.mxu0 0
        %1679 = vmatprep.subr.bf16.mxu0 0
        %1680 = vmatpush2.bf16.msra.mxu0 0
        %1681 = vmatprep.subr.bf16.mxu0 0
        %1682 = vmatpush2.bf16.msra.mxu0 %v1632
        %1683 = vmatprep.subr.bf16.mxu0 0
        %1684 = vmatpush2.bf16.msra.mxu0 %v1631
        %1685 = vmatprep.subr.bf16.mxu0 0
        %1686 = vmatpush2.bf16.msra.mxu0 %v1630
        %1687 = vmatprep.subr.bf16.mxu0 0
        %1688 = vmatpush2.bf16.msra.mxu0 %v1629
        %1689 = vmatprep.mubr.bf16.mxu0 %v1646
        %1690 = vmatmul.mubr.bf16.gmra.mxu0 %v1559
        %v1691 = vpop.f32.mrf.mxu0
        %v1692 = vadd.f32 0.0, %v1691
        %v1693 = vpop.f32.mrf.mxu0
        %v1694 = vpop.f32.mrf.mxu0
        %v1695 = vadd.f32 0.0, %v1694
        %v1696 = vpop.f32.mrf.mxu0
        %1697 = vmatprep.mubr.bf16.mxu0 %v1649
        %1698 = vmatmul.mubr.bf16.gmra.mxu0 %v1563
        %v1699 = vpop.f32.mrf.mxu0
        %v1700 = vadd.f32 0.0, %v1699
        %v1701 = vpop.f32.mrf.mxu0
        %v1702 = vpop.f32.mrf.mxu0
        %v1703 = vadd.f32 0.0, %v1702
        %v1704 = vpop.f32.mrf.mxu0
        %1705 = vmatprep.mubr.bf16.mxu0 %v1652
        %1706 = vmatmul.mubr.bf16.gmra.mxu0 %v1567
        %v1707 = vpop.f32.mrf.mxu0
        %v1708 = vadd.f32 0.0, %v1707
        %v1709 = vpop.f32.mrf.mxu0
        %v1710 = vpop.f32.mrf.mxu0
        %v1711 = vadd.f32 0.0, %v1710
        %v1712 = vpop.f32.mrf.mxu0
        %1713 = vmatprep.mubr.bf16.mxu0 %v1655
        %1714 = vmatmul.mubr.bf16.gmra.mxu0 %v1571
        %v1715 = vpop.f32.mrf.mxu0
        %v1716 = vadd.f32 0.0, %v1715
        %v1717 = vpop.f32.mrf.mxu0
        %v1718 = vpop.f32.mrf.mxu0
        %v1719 = vadd.f32 0.0, %v1718
        %v1720 = vpop.f32.mrf.mxu0
        %1721 = vdwg.mxu0
        %v1746 = vunpack.c.l.b16 %v1062
        %v1747 = vunpack.c.l.b16 %v1063
        %v1748 = vunpack.c.l.b16 %v1064
        %v1749 = vunpack.c.l.b16 %v1065
        %v1750 = vunpack.c.l.b16 %v1066
        %v1751 = vunpack.c.l.b16 %v1067
        %v1752 = vunpack.c.l.b16 %v1068
        %v1753 = vunpack.c.l.b16 %v1069
        %v1754 = vunpack.c.l.b16 %v1070
        %v1755 = vunpack.c.l.b16 %v1071
        %v1756 = vunpack.c.l.b16 %v1072
        %v1757 = vunpack.c.l.b16 %v1073
        %v1758 = vunpack.c.l.b16 %v1074
        %v1759 = vunpack.c.l.b16 %v1075
        %v1760 = vunpack.c.l.b16 %v1076
        %v1761 = vunpack.c.l.b16 %v1077
        %v1762 = vunpack.c.l.b16 %v1078
        %v1763 = vunpack.c.l.b16 %v1079
        %v1764 = vunpack.c.l.b16 %v1080
        %v1765 = vunpack.c.l.b16 %v1081
        %v1766 = vunpack.c.l.b16 %v1082
        %v1767 = vunpack.c.l.b16 %v1083
        %v1768 = vunpack.c.l.b16 %v1084
        %v1769 = vunpack.c.l.b16 %v1085
        %v1770 = vpack.c.b16 %v1747, %v1746
        %v1771 = vpack.c.b16 %v1749, %v1748
        %v1772 = vpack.c.b16 %v1751, %v1750
        %v1773 = vpack.c.b16 %v1753, %v1752
        %v1774 = vpack.c.b16 %v1755, %v1754
        %v1775 = vpack.c.b16 %v1757, %v1756
        %v1776 = vpack.c.b16 %v1759, %v1758
        %v1777 = vpack.c.b16 %v1761, %v1760
        %v1778 = vpack.c.b16 %v1763, %v1762
        %v1779 = vpack.c.b16 %v1765, %v1764
        %v1780 = vpack.c.b16 %v1767, %v1766
        %v1781 = vpack.c.b16 %v1769, %v1768
        %v1795 = vsel %vm1340, %v1336, 0
        %v1798 = vsel %vm1340, %v1337, 0
        %v1801 = vsel %vm1340, %v1338, 0
        %v1804 = vsel %vm1340, %v1339, 0
        %1806 = vmatprep.subr.bf16.mxu0 0
        %1807 = vmatpush1.bf16.msra.mxu0 %v1777
        %1808 = vmatprep.subr.bf16.mxu0 0
        %1809 = vmatpush1.bf16.msra.mxu0 %v1776
        %1810 = vmatprep.subr.bf16.mxu0 0
        %1811 = vmatpush1.bf16.msra.mxu0 %v1775
        %1812 = vmatprep.subr.bf16.mxu0 0
        %1813 = vmatpush1.bf16.msra.mxu0 %v1774
        %1814 = vmatprep.subr.bf16.mxu0 0
        %1815 = vmatpush1.bf16.msra.mxu0 %v1773
        %1816 = vmatprep.subr.bf16.mxu0 0
        %1817 = vmatpush1.bf16.msra.mxu0 %v1772
        %1818 = vmatprep.subr.bf16.mxu0 0
        %1819 = vmatpush1.bf16.msra.mxu0 %v1771
        %1820 = vmatprep.subr.bf16.mxu0 0
        %1821 = vmatpush1.bf16.msra.mxu0 %v1770
        %1822 = vmatprep.subr.bf16.mxu0 0
        %1823 = vmatpush2.bf16.msra.mxu0 0
        %1824 = vmatprep.subr.bf16.mxu0 0
        %1825 = vmatpush2.bf16.msra.mxu0 0
        %1826 = vmatprep.subr.bf16.mxu0 0
        %1827 = vmatpush2.bf16.msra.mxu0 0
        %1828 = vmatprep.subr.bf16.mxu0 0
        %1829 = vmatpush2.bf16.msra.mxu0 0
        %1830 = vmatprep.subr.bf16.mxu0 0
        %1831 = vmatpush2.bf16.msra.mxu0 %v1781
        %1832 = vmatprep.subr.bf16.mxu0 0
        %1833 = vmatpush2.bf16.msra.mxu0 %v1780
        %1834 = vmatprep.subr.bf16.mxu0 0
        %1835 = vmatpush2.bf16.msra.mxu0 %v1779
        %1836 = vmatprep.subr.bf16.mxu0 0
        %1837 = vmatpush2.bf16.msra.mxu0 %v1778
        %1838 = vmatprep.mubr.bf16.mxu0 %v1795
        %1839 = vmatmul.mubr.bf16.gmra.mxu0 %v1343
        %v1840 = vpop.f32.mrf.mxu0
        %v1841 = vadd.f32 %v1692, %v1840
        %v1842 = vpop.f32.mrf.mxu0
        %v1843 = vpop.f32.mrf.mxu0
        %v1844 = vadd.f32 %v1695, %v1843
        %v1845 = vpop.f32.mrf.mxu0
        %1846 = vmatprep.mubr.bf16.mxu0 %v1798
        %1847 = vmatmul.mubr.bf16.gmra.mxu0 %v1347
        %v1848 = vpop.f32.mrf.mxu0
        %v1849 = vadd.f32 %v1700, %v1848
        %v1850 = vpop.f32.mrf.mxu0
        %v1851 = vpop.f32.mrf.mxu0
        %v1852 = vadd.f32 %v1703, %v1851
        %v1853 = vpop.f32.mrf.mxu0
        %1854 = vmatprep.mubr.bf16.mxu0 %v1801
        %1855 = vmatmul.mubr.bf16.gmra.mxu0 %v1351
        %v1856 = vpop.f32.mrf.mxu0
        %v1857 = vadd.f32 %v1708, %v1856
        %v1858 = vpop.f32.mrf.mxu0
        %v1859 = vpop.f32.mrf.mxu0
        %v1860 = vadd.f32 %v1711, %v1859
        %v1861 = vpop.f32.mrf.mxu0
        %1862 = vmatprep.mubr.bf16.mxu0 %v1804
        %1863 = vmatmul.mubr.bf16.gmra.mxu0 %v1355
        %v1864 = vpop.f32.mrf.mxu0
        %v1865 = vadd.f32 %v1716, %v1864
        %v1866 = vpop.f32.mrf.mxu0
        %v1867 = vpop.f32.mrf.mxu0
        %v1868 = vadd.f32 %v1719, %v1867
        %v1869 = vpop.f32.mrf.mxu0
        %1870 = vdwg.mxu0
        %s1871 = scalar_lea.vmem [#allocation3], 24
        %v1872 = vld [vmem:[%s1871] sm:$0xf]
        %v1873 = vld [vmem:[%s1871 + $0x4] sm:$0xf]
        %v1874 = vld [vmem:[%s1871 + $0xc] sm:$0xf]
        %v1875 = vld [vmem:[%s1871 + $0x10] sm:$0xf]
        %v1876 = vld [vmem:[%s1871 + $0x18] sm:$0xf]
        %v1877 = vld [vmem:[%s1871 + $0x1c] sm:$0xf]
        %v1878 = vld [vmem:[%s1871 + $0x24] sm:$0xf]
        %v1879 = vld [vmem:[%s1871 + $0x28] sm:$0xf]
        %v1880 = vld [vmem:[%s1871 + $0x8] sm:$0x1]
        %v1881 = vld [vmem:[%s1871 + $0x14] sm:$0x1]
        %v1882 = vld [vmem:[%s1871 + $0x20] sm:$0x1]
        %v1883 = vld [vmem:[%s1871 + $0x2c] sm:$0x1]
        %v1885 = vshrl.u32 %v1872, 16
        %v1887 = vrot.slane %v1885, 4
        %v1888 = vshll.u32 %v1872, 16
        %v1890 = vrot.slane %v1888, 5
        %v1891 = vor.u32 %v1887, %v1890
        %v1892 = vrot.slane %v1891, 4
        %v1894 = vshll.u32 %v1873, 16
        %v1896 = vrot.slane %v1894, 5
        %v1897 = vsel %vm1148, %v1892, %v1896
        %v1898 = vshrl.u32 %v1873, 16
        %v1900 = vrot.slane %v1898, 4
        %v1901 = vor.u32 %v1900, %v1896
        %v1902 = vrot.slane %v1901, 4
        %v1904 = vshll.u32 %v1880, 16
        %v1906 = vrot.slane %v1904, 5
        %v1907 = vsel %vm1148, %v1902, %v1906
        %v1909 = vshrl.u32 %v1874, 16
        %v1911 = vrot.slane %v1909, 4
        %v1912 = vshll.u32 %v1874, 16
        %v1914 = vrot.slane %v1912, 5
        %v1915 = vor.u32 %v1911, %v1914
        %v1916 = vrot.slane %v1915, 4
        %v1918 = vshll.u32 %v1875, 16
        %v1920 = vrot.slane %v1918, 5
        %v1921 = vsel %vm1148, %v1916, %v1920
        %v1922 = vshrl.u32 %v1875, 16
        %v1924 = vrot.slane %v1922, 4
        %v1925 = vor.u32 %v1924, %v1920
        %v1926 = vrot.slane %v1925, 4
        %v1928 = vshll.u32 %v1881, 16
        %v1930 = vrot.slane %v1928, 5
        %v1931 = vsel %vm1148, %v1926, %v1930
        %v1933 = vshrl.u32 %v1876, 16
        %v1935 = vrot.slane %v1933, 4
        %v1936 = vshll.u32 %v1876, 16
        %v1938 = vrot.slane %v1936, 5
        %v1939 = vor.u32 %v1935, %v1938
        %v1940 = vrot.slane %v1939, 4
        %v1942 = vshll.u32 %v1877, 16
        %v1944 = vrot.slane %v1942, 5
        %v1945 = vsel %vm1148, %v1940, %v1944
        %v1946 = vshrl.u32 %v1877, 16
        %v1948 = vrot.slane %v1946, 4
        %v1949 = vor.u32 %v1948, %v1944
        %v1950 = vrot.slane %v1949, 4
        %v1952 = vshll.u32 %v1882, 16
        %v1954 = vrot.slane %v1952, 5
        %v1955 = vsel %vm1148, %v1950, %v1954
        %v1957 = vshrl.u32 %v1878, 16
        %v1959 = vrot.slane %v1957, 4
        %v1960 = vshll.u32 %v1878, 16
        %v1962 = vrot.slane %v1960, 5
        %v1963 = vor.u32 %v1959, %v1962
        %v1964 = vrot.slane %v1963, 4
        %v1966 = vshll.u32 %v1879, 16
        %v1968 = vrot.slane %v1966, 5
        %v1969 = vsel %vm1148, %v1964, %v1968
        %v1970 = vshrl.u32 %v1879, 16
        %v1972 = vrot.slane %v1970, 4
        %v1973 = vor.u32 %v1972, %v1968
        %v1974 = vrot.slane %v1973, 4
        %v1976 = vshll.u32 %v1883, 16
        %v1978 = vrot.slane %v1976, 5
        %v1979 = vsel %vm1148, %v1974, %v1978
        %v1980 = vld [vmem:[%s1871] sm:$0xe]
        %v1981 = vld [vmem:[%s1871 + $0xc] sm:$0xe]
        %v1982 = vld [vmem:[%s1871 + $0x18] sm:$0xe]
        %v1983 = vld [vmem:[%s1871 + $0x24] sm:$0xe]
        %v1996 = vrot.slane %v1980, 5
        %v1997 = vrot.slane %v1996, 4
        %v1998 = vrot.slane %v1873, 5
        %v1999 = vsel %vm1263, %v1997, %v1998
        %v2000 = vrot.slane %v1998, 4
        %v2001 = vrot.slane %v1880, 5
        %v2002 = vsel %vm1263, %v2000, %v2001
        %v2003 = vrot.slane %v1981, 5
        %v2004 = vrot.slane %v2003, 4
        %v2005 = vrot.slane %v1875, 5
        %v2006 = vsel %vm1263, %v2004, %v2005
        %v2007 = vrot.slane %v2005, 4
        %v2008 = vrot.slane %v1881, 5
        %v2009 = vsel %vm1263, %v2007, %v2008
        %v2010 = vrot.slane %v1982, 5
        %v2011 = vrot.slane %v2010, 4
        %v2012 = vrot.slane %v1877, 5
        %v2013 = vsel %vm1263, %v2011, %v2012
        %v2014 = vrot.slane %v2012, 4
        %v2015 = vrot.slane %v1882, 5
        %v2016 = vsel %vm1263, %v2014, %v2015
        %v2017 = vrot.slane %v1983, 5
        %v2018 = vrot.slane %v2017, 4
        %v2019 = vrot.slane %v1879, 5
        %v2020 = vsel %vm1263, %v2018, %v2019
        %v2021 = vrot.slane %v2019, 4
        %v2022 = vrot.slane %v1883, 5
        %v2023 = vsel %vm1263, %v2021, %v2022
        %v2028 = vunpack.c.l.b16 %v1872
        %v2029 = vunpack.c.l.b16 %v1873
        %v2030 = vunpack.c.l.b16 %v1874
        %v2031 = vunpack.c.l.b16 %v1875
        %v2032 = vunpack.c.l.b16 %v1876
        %v2033 = vunpack.c.l.b16 %v1877
        %v2034 = vunpack.c.l.b16 %v1878
        %v2035 = vunpack.c.l.b16 %v1879
        %v2036 = vpack.c.b16 %v2029, %v2028
        %v2037 = vpack.c.b16 %v2031, %v2030
        %v2038 = vpack.c.b16 %v2033, %v2032
        %v2039 = vpack.c.b16 %v2035, %v2034
        %v2040 = vunpack.c.l.b16 %v1897
        %v2041 = vunpack.c.l.b16 %v1907
        %v2042 = vunpack.c.l.b16 %v1921
        %v2043 = vunpack.c.l.b16 %v1931
        %v2044 = vunpack.c.l.b16 %v1945
        %v2045 = vunpack.c.l.b16 %v1955
        %v2046 = vunpack.c.l.b16 %v1969
        %v2047 = vunpack.c.l.b16 %v1979
        %v2048 = vpack.c.b16 %v2041, %v2040
        %v2049 = vpack.c.b16 %v2043, %v2042
        %v2050 = vpack.c.b16 %v2045, %v2044
        %v2051 = vpack.c.b16 %v2047, %v2046
        %2052 = vrot.lane.b32.xlu0 %v2048, 64
        %v2053 = vpop.permute.xlu0 %2052
        %2054 = vrot.lane.b32.xlu0 %v2049, 64
        %v2055 = vpop.permute.xlu0 %2054
        %2056 = vrot.lane.b32.xlu0 %v2050, 64
        %v2057 = vpop.permute.xlu0 %2056
        %2058 = vrot.lane.b32.xlu0 %v2051, 64
        %v2059 = vpop.permute.xlu0 %2058
        %v2060 = vunpack.c.l.b16 %v1999
        %v2061 = vunpack.c.l.b16 %v2002
        %v2062 = vunpack.c.l.b16 %v2006
        %v2063 = vunpack.c.l.b16 %v2009
        %v2064 = vunpack.c.l.b16 %v2013
        %v2065 = vunpack.c.l.b16 %v2016
        %v2066 = vunpack.c.l.b16 %v2020
        %v2067 = vunpack.c.l.b16 %v2023
        %v2068 = vpack.c.b16 %v2061, %v2060
        %v2069 = vpack.c.b16 %v2063, %v2062
        %v2070 = vpack.c.b16 %v2065, %v2064
        %v2071 = vpack.c.b16 %v2067, %v2066
        %v2074 = vsel %vm1340, %v2036, %v2053
        %v2078 = vsel %vm1340, %v2037, %v2055
        %v2082 = vsel %vm1340, %v2038, %v2057
        %v2086 = vsel %vm1340, %v2039, %v2059
        %v2112 = vunpack.c.l.b16 %v1110
        %v2113 = vunpack.c.l.b16 %v1111
        %v2114 = vunpack.c.l.b16 %v1112
        %v2115 = vunpack.c.l.b16 %v1113
        %v2116 = vunpack.c.l.b16 %v1114
        %v2117 = vunpack.c.l.b16 %v1115
        %v2118 = vunpack.c.l.b16 %v1116
        %v2119 = vunpack.c.l.b16 %v1117
        %v2120 = vunpack.c.l.b16 %v1118
        %v2121 = vunpack.c.l.b16 %v1119
        %v2122 = vunpack.c.l.b16 %v1120
        %v2123 = vunpack.c.l.b16 %v1121
        %v2124 = vunpack.c.l.b16 %v1122
        %v2125 = vunpack.c.l.b16 %v1123
        %v2126 = vunpack.c.l.b16 %v1124
        %v2127 = vunpack.c.l.b16 %v1125
        %v2128 = vunpack.c.l.b16 %v1126
        %v2129 = vunpack.c.l.b16 %v1127
        %v2130 = vunpack.c.l.b16 %v1128
        %v2131 = vunpack.c.l.b16 %v1129
        %v2132 = vunpack.c.l.b16 %v1130
        %v2133 = vunpack.c.l.b16 %v1131
        %v2134 = vunpack.c.l.b16 %v1132
        %v2135 = vunpack.c.l.b16 %v1133
        %v2136 = vpack.c.b16 %v2113, %v2112
        %v2137 = vpack.c.b16 %v2115, %v2114
        %v2138 = vpack.c.b16 %v2117, %v2116
        %v2139 = vpack.c.b16 %v2119, %v2118
        %v2140 = vpack.c.b16 %v2121, %v2120
        %v2141 = vpack.c.b16 %v2123, %v2122
        %v2142 = vpack.c.b16 %v2125, %v2124
        %v2143 = vpack.c.b16 %v2127, %v2126
        %v2144 = vpack.c.b16 %v2129, %v2128
        %v2145 = vpack.c.b16 %v2131, %v2130
        %v2146 = vpack.c.b16 %v2133, %v2132
        %v2147 = vpack.c.b16 %v2135, %v2134
        %v2161 = vsel %vm1340, %v2068, 0
        %v2164 = vsel %vm1340, %v2069, 0
        %v2167 = vsel %vm1340, %v2070, 0
        %v2170 = vsel %vm1340, %v2071, 0
        %2172 = vmatprep.subr.bf16.mxu0 0
        %2173 = vmatpush1.bf16.msra.mxu0 %v2143
        %2174 = vmatprep.subr.bf16.mxu0 0
        %2175 = vmatpush1.bf16.msra.mxu0 %v2142
        %2176 = vmatprep.subr.bf16.mxu0 0
        %2177 = vmatpush1.bf16.msra.mxu0 %v2141
        %2178 = vmatprep.subr.bf16.mxu0 0
        %2179 = vmatpush1.bf16.msra.mxu0 %v2140
        %2180 = vmatprep.subr.bf16.mxu0 0
        %2181 = vmatpush1.bf16.msra.mxu0 %v2139
        %2182 = vmatprep.subr.bf16.mxu0 0
        %2183 = vmatpush1.bf16.msra.mxu0 %v2138
        %2184 = vmatprep.subr.bf16.mxu0 0
        %2185 = vmatpush1.bf16.msra.mxu0 %v2137
        %2186 = vmatprep.subr.bf16.mxu0 0
        %2187 = vmatpush1.bf16.msra.mxu0 %v2136
        %2188 = vmatprep.subr.bf16.mxu0 0
        %2189 = vmatpush2.bf16.msra.mxu0 0
        %2190 = vmatprep.subr.bf16.mxu0 0
        %2191 = vmatpush2.bf16.msra.mxu0 0
        %2192 = vmatprep.subr.bf16.mxu0 0
        %2193 = vmatpush2.bf16.msra.mxu0 0
        %2194 = vmatprep.subr.bf16.mxu0 0
        %2195 = vmatpush2.bf16.msra.mxu0 0
        %2196 = vmatprep.subr.bf16.mxu0 0
        %2197 = vmatpush2.bf16.msra.mxu0 %v2147
        %2198 = vmatprep.subr.bf16.mxu0 0
        %2199 = vmatpush2.bf16.msra.mxu0 %v2146
        %2200 = vmatprep.subr.bf16.mxu0 0
        %2201 = vmatpush2.bf16.msra.mxu0 %v2145
        %2202 = vmatprep.subr.bf16.mxu0 0
        %2203 = vmatpush2.bf16.msra.mxu0 %v2144
        %2204 = vmatprep.mubr.bf16.mxu0 %v2161
        %2205 = vmatmul.mubr.bf16.gmra.mxu0 %v2074
        %v2206 = vpop.f32.mrf.mxu0
        %v2207 = vadd.f32 0.0, %v2206
        %v2208 = vpop.f32.mrf.mxu0
        %v2209 = vpop.f32.mrf.mxu0
        %v2210 = vadd.f32 0.0, %v2209
        %v2211 = vpop.f32.mrf.mxu0
        %2212 = vmatprep.mubr.bf16.mxu0 %v2164
        %2213 = vmatmul.mubr.bf16.gmra.mxu0 %v2078
        %v2214 = vpop.f32.mrf.mxu0
        %v2215 = vadd.f32 0.0, %v2214
        %v2216 = vpop.f32.mrf.mxu0
        %v2217 = vpop.f32.mrf.mxu0
        %v2218 = vadd.f32 0.0, %v2217
        %v2219 = vpop.f32.mrf.mxu0
        %2220 = vmatprep.mubr.bf16.mxu0 %v2167
        %2221 = vmatmul.mubr.bf16.gmra.mxu0 %v2082
        %v2222 = vpop.f32.mrf.mxu0
        %v2223 = vadd.f32 0.0, %v2222
        %v2224 = vpop.f32.mrf.mxu0
        %v2225 = vpop.f32.mrf.mxu0
        %v2226 = vadd.f32 0.0, %v2225
        %v2227 = vpop.f32.mrf.mxu0
        %2228 = vmatprep.mubr.bf16.mxu0 %v2170
        %2229 = vmatmul.mubr.bf16.gmra.mxu0 %v2086
        %v2230 = vpop.f32.mrf.mxu0
        %v2231 = vadd.f32 0.0, %v2230
        %v2232 = vpop.f32.mrf.mxu0
        %v2233 = vpop.f32.mrf.mxu0
        %v2234 = vadd.f32 0.0, %v2233
        %v2235 = vpop.f32.mrf.mxu0
        %2236 = vdwg.mxu0
        %v2237 = vadd.f32 %v1841, %v2207
        %v2238 = vadd.f32 %v1844, %v2210
        %v2239 = vadd.f32 %v1849, %v2215
        %v2240 = vadd.f32 %v1852, %v2218
        %v2241 = vadd.f32 %v1857, %v2223
        %v2242 = vadd.f32 %v1860, %v2226
        %v2243 = vadd.f32 %v1865, %v2231
        %v2244 = vadd.f32 %v1868, %v2234
        %v2245 = vld [vmem:[%s6] sm:$0x1]
        %v2247 = vlaneseq
        %v2248 = vshrl.u32 %v2247, 7
        %v2249 = vsub.s32 0, %v2248
        %v2250 = vrot.slane %v2245, %v2249
        %v2252 = vmul.f32 %v2237, %v2250
        %v2253 = vmul.f32 %v2238, %v2250
        %v2254 = vmul.f32 %v2239, %v2250
        %v2255 = vmul.f32 %v2240, %v2250
        %v2256 = vmul.f32 %v2241, %v2250
        %v2257 = vmul.f32 %v2242, %v2250
        %v2258 = vmul.f32 %v2243, %v2250
        %v2259 = vmul.f32 %v2244, %v2250
        %v2260 = vld [vmem:[%s7] sm:$0x1]
        %v2262 = vlaneseq
        %v2263 = vshrl.u32 %v2262, 7
        %v2264 = vsub.s32 0, %v2263
        %v2265 = vrot.slane %v2260, %v2264
        %v2267 = vadd.f32 %v2252, %v2265
        %v2268 = vadd.f32 %v2253, %v2265
        %v2269 = vadd.f32 %v2254, %v2265
        %v2270 = vadd.f32 %v2255, %v2265
        %v2271 = vadd.f32 %v2256, %v2265
        %v2272 = vadd.f32 %v2257, %v2265
        %v2273 = vadd.f32 %v2258, %v2265
        %v2274 = vadd.f32 %v2259, %v2265
        %v2275 = vmax.f32 %v2267, 0.0
        %v2276 = vmax.f32 %v2268, 0.0
        %v2277 = vmax.f32 %v2269, 0.0
        %v2278 = vmax.f32 %v2270, 0.0
        %v2279 = vmax.f32 %v2271, 0.0
        %v2280 = vmax.f32 %v2272, 0.0
        %v2281 = vmax.f32 %v2273, 0.0
        %v2282 = vmax.f32 %v2274, 0.0
        %v2283 = vpack.c.bf16 %v2276, %v2275
        %v2284 = vpack.c.bf16 %v2278, %v2277
        %v2285 = vpack.c.bf16 %v2280, %v2279
        %v2286 = vpack.c.bf16 %v2282, %v2281
        %v2287 = vld [vmem:[%s3] sm:$0xf]
        %v2288 = vld [vmem:[%s3 + $0x4] sm:$0xf]
        %v2289 = vld [vmem:[%s3 + $0x8] sm:$0xf]
        %v2290 = vld [vmem:[%s3 + $0xc] sm:$0xf]
        %v2291 = vld [vmem:[%s3 + $0x10] sm:$0xf]
        %v2292 = vld [vmem:[%s3 + $0x14] sm:$0xf]
        %v2293 = vld [vmem:[%s3 + $0x18] sm:$0xf]
        %v2294 = vld [vmem:[%s3 + $0x1c] sm:$0xf]
        %v2303 = vunpack.c.l.b16 %v2287
        %v2304 = vunpack.c.l.b16 %v2288
        %v2305 = vunpack.c.l.b16 %v2289
        %v2306 = vunpack.c.l.b16 %v2290
        %v2307 = vunpack.c.l.b16 %v2291
        %v2308 = vunpack.c.l.b16 %v2292
        %v2309 = vunpack.c.l.b16 %v2293
        %v2310 = vunpack.c.l.b16 %v2294
        %v2311 = vpack.c.b16 %v2304, %v2303
        %v2312 = vpack.c.b16 %v2306, %v2305
        %v2313 = vpack.c.b16 %v2308, %v2307
        %v2314 = vpack.c.b16 %v2310, %v2309
        %v2320 = vsel %vm1340, %v2283, 0
        %v2323 = vsel %vm1340, %v2284, 0
        %v2326 = vsel %vm1340, %v2285, 0
        %v2329 = vsel %vm1340, %v2286, 0
        %2331 = vmatprep.subr.bf16.mxu0 0
        %2332 = vmatpush1.bf16.msra.mxu0 0
        %2333 = vmatprep.subr.bf16.mxu0 0
        %2334 = vmatpush1.bf16.msra.mxu0 0
        %2335 = vmatprep.subr.bf16.mxu0 0
        %2336 = vmatpush1.bf16.msra.mxu0 0
        %2337 = vmatprep.subr.bf16.mxu0 0
        %2338 = vmatpush1.bf16.msra.mxu0 0
        %2339 = vmatprep.subr.bf16.mxu0 0
        %2340 = vmatpush1.bf16.msra.mxu0 %v2314
        %2341 = vmatprep.subr.bf16.mxu0 0
        %2342 = vmatpush1.bf16.msra.mxu0 %v2313
        %2343 = vmatprep.subr.bf16.mxu0 0
        %2344 = vmatpush1.bf16.msra.mxu0 %v2312
        %2345 = vmatprep.subr.bf16.mxu0 0
        %2346 = vmatpush1.bf16.msra.mxu0 %v2311
        %2347 = vmatprep.subr.bf16.mxu0 0
        %2348 = vmatpush2.bf16.msra.mxu0 0
        %2349 = vmatprep.subr.bf16.mxu0 0
        %2350 = vmatpush2.bf16.msra.mxu0 0
        %2351 = vmatprep.subr.bf16.mxu0 0
        %2352 = vmatpush2.bf16.msra.mxu0 0
        %2353 = vmatprep.subr.bf16.mxu0 0
        %2354 = vmatpush2.bf16.msra.mxu0 0
        %2355 = vmatprep.subr.bf16.mxu0 0
        %2356 = vmatpush2.bf16.msra.mxu0 0
        %2357 = vmatprep.subr.bf16.mxu0 0
        %2358 = vmatpush2.bf16.msra.mxu0 0
        %2359 = vmatprep.subr.bf16.mxu0 0
        %2360 = vmatpush2.bf16.msra.mxu0 0
        %2361 = vmatprep.subr.bf16.mxu0 0
        %2362 = vmatpush2.bf16.msra.mxu0 0
        %2363 = vmatprep.mubr.bf16.mxu0 0
        %2364 = vmatmul.mubr.bf16.gmra.mxu0 %v2320
        %v2365 = vpop.f32.mrf.mxu0
        %v2366 = vadd.f32 0.0, %v2365
        %v2367 = vpop.f32.mrf.mxu0
        %v2368 = vpop.f32.mrf.mxu0
        %v2369 = vadd.f32 0.0, %v2368
        %v2370 = vpop.f32.mrf.mxu0
        %2371 = vmatprep.mubr.bf16.mxu0 0
        %2372 = vmatmul.mubr.bf16.gmra.mxu0 %v2323
        %v2373 = vpop.f32.mrf.mxu0
        %v2374 = vadd.f32 0.0, %v2373
        %v2375 = vpop.f32.mrf.mxu0
        %v2376 = vpop.f32.mrf.mxu0
        %v2377 = vadd.f32 0.0, %v2376
        %v2378 = vpop.f32.mrf.mxu0
        %2379 = vmatprep.mubr.bf16.mxu0 0
        %2380 = vmatmul.mubr.bf16.gmra.mxu0 %v2326
        %v2381 = vpop.f32.mrf.mxu0
        %v2382 = vadd.f32 0.0, %v2381
        %v2383 = vpop.f32.mrf.mxu0
        %v2384 = vpop.f32.mrf.mxu0
        %v2385 = vadd.f32 0.0, %v2384
        %v2386 = vpop.f32.mrf.mxu0
        %2387 = vmatprep.mubr.bf16.mxu0 0
        %2388 = vmatmul.mubr.bf16.gmra.mxu0 %v2329
        %v2389 = vpop.f32.mrf.mxu0
        %v2390 = vadd.f32 0.0, %v2389
        %v2391 = vpop.f32.mrf.mxu0
        %v2392 = vpop.f32.mrf.mxu0
        %v2393 = vadd.f32 0.0, %v2392
        %v2394 = vpop.f32.mrf.mxu0
        %2395 = vdwg.mxu0
        %v2396 = vld [vmem:[%s333] sm:$0xff]
        %v2397 = vld [vmem:[%s333 + $0x8] sm:$0xff]
        %v2398 = vld [vmem:[%s333 + $0x10] sm:$0xff]
        %v2399 = vld [vmem:[%s333 + $0x18] sm:$0xff]
        %v2400 = vld [vmem:[%s333 + $0x20] sm:$0xff]
        %v2401 = vld [vmem:[%s333 + $0x28] sm:$0xff]
        %v2402 = vld [vmem:[%s333 + $0x30] sm:$0xff]
        %v2403 = vld [vmem:[%s333 + $0x38] sm:$0xff]
        %v2404 = vld [vmem:[%s8] sm:$0x1]
        %v2406 = vlaneseq
        %v2407 = vshrl.u32 %v2406, 7
        %v2408 = vsub.s32 0, %v2407
        %v2409 = vrot.slane %v2404, %v2408
        %v2411 = vmul.f32 %v2366, %v2409
        %v2412 = vmul.f32 %v2369, %v2409
        %v2413 = vmul.f32 %v2374, %v2409
        %v2414 = vmul.f32 %v2377, %v2409
        %v2415 = vmul.f32 %v2382, %v2409
        %v2416 = vmul.f32 %v2385, %v2409
        %v2417 = vmul.f32 %v2390, %v2409
        %v2418 = vmul.f32 %v2393, %v2409
        %v2419 = vld [vmem:[%s9] sm:$0x1]
        %v2421 = vlaneseq
        %v2422 = vshrl.u32 %v2421, 7
        %v2423 = vsub.s32 0, %v2422
        %v2424 = vrot.slane %v2419, %v2423
        %v2426 = vadd.f32 %v2411, %v2424
        %v2427 = vadd.f32 %v2412, %v2424
        %v2428 = vadd.f32 %v2413, %v2424
        %v2429 = vadd.f32 %v2414, %v2424
        %v2430 = vadd.f32 %v2415, %v2424
        %v2431 = vadd.f32 %v2416, %v2424
        %v2432 = vadd.f32 %v2417, %v2424
        %v2433 = vadd.f32 %v2418, %v2424
        %v2434 = vadd.f32 %v2426, %v2396
        %v2435 = vadd.f32 %v2427, %v2397
        %v2436 = vadd.f32 %v2428, %v2398
        %v2437 = vadd.f32 %v2429, %v2399
        %v2438 = vadd.f32 %v2430, %v2400
        %v2439 = vadd.f32 %v2431, %v2401
        %v2440 = vadd.f32 %v2432, %v2402
        %v2441 = vadd.f32 %v2433, %v2403
        %v2442 = vmax.f32 %v2434, 0.0
        %v2443 = vmax.f32 %v2435, 0.0
        %v2444 = vmax.f32 %v2436, 0.0
        %v2445 = vmax.f32 %v2437, 0.0
        %v2446 = vmax.f32 %v2438, 0.0
        %v2447 = vmax.f32 %v2439, 0.0
        %v2448 = vmax.f32 %v2440, 0.0
        %v2449 = vmax.f32 %v2441, 0.0
        %2450 = vst [vmem:[%s325] sm:$0xff] %v2442
        %2451 = vst [vmem:[%s325 + $0x8] sm:$0xff] %v2443
        %2452 = vst [vmem:[%s325 + $0x10] sm:$0xff] %v2444
        %2453 = vst [vmem:[%s325 + $0x18] sm:$0xff] %v2445
        %2454 = vst [vmem:[%s325 + $0x20] sm:$0xff] %v2446
        %2455 = vst [vmem:[%s325 + $0x28] sm:$0xff] %v2447
        %2456 = vst [vmem:[%s325 + $0x30] sm:$0xff] %v2448
        %2457 = vst [vmem:[%s325 + $0x38] sm:$0xff] %v2449
        %s2458 = sand.u32 %s235, 1
        %s2459 = scalar_lea.sflag [#allocation6], %s2458
        %s2460 = sand.u32 %s235, 1
        %s2461 = smul.addr %s2460, 64
        %s2462 = scalar_lea.vmem [#allocation5], %s2461
        // Predicated region
        $region183: #{tpu_custom_call.1} parent=55 // pred_check
          %p2463 = pneg %p245
        $region184: #{tpu_custom_call.1} parent=55 // pred_check_branch
          %2465 = sbr.rel (%p2463) target = $region186
        $region185: #{tpu_custom_call.1} parent=55 // pred_region
          %s2466 = smul.u32 4, %s29
          %s2468 = ssub.s32 1024, 1024
          %2469 = vsyncadd %s2459, %s2468
          %s2470 = smul.addr %s2466, 2
          %s2471 = smul.addr %s28, 16
          %s2472 = sadd.s32 %s2470, %s2471
          %s2473 = smul.addr %s2472, 128
          %s2474 = scalar_lea.hbm %s10, %s2473
          %s2475 = sshll.u32 %s2462, 4
          %s2476 = int_to_ptr.vmem [resolvable:$true] %s2475
          %2481 = dma.vmem_to_hbm [thread:$0]  %s2476, 1024, %s2474, %s2459, 128, 128, 8
        $region186: #{tpu_custom_call.1} parent=55 // pred_fallthru
          _
      $region56: #{tpu_custom_call.1} parent=5 // pred_fallthru
        _
      %p2482 = scmp.le.s32.totalorder 2, %s19
      // Predicated region
      $region187: #{tpu_custom_call.1} parent=5 // pred_check
        %p2483 = pneg %p2482
      $region188: #{tpu_custom_call.1} parent=5 // pred_check_branch
        %2485 = sbr.rel (%p2483) target = $region190
      $region189: #{tpu_custom_call.1} parent=5 // pred_region
        %s2486 = ssub.s32 %s19, 2
        // Predicated region
        $region191: #{tpu_custom_call.1} parent=189 // pred_check
          %p2487 = pneg %p251
        $region192: #{tpu_custom_call.1} parent=189 // pred_check_branch
          %2489 = sbr.rel (%p2487) target = $region194
        $region193: #{tpu_custom_call.1} parent=189 // pred_region
          %s2490 = sand.u32 %s236, 1
          %s2491 = scalar_lea.sflag [#allocation6], %s2490
          %s2492 = sand.u32 %s236, 1
          %s2493 = smul.addr %s2492, 64
          %s2494 = scalar_lea.vmem [#allocation5], %s2493
          %2495 = dma.done %s2491, 1024
        $region194: #{tpu_custom_call.1} parent=189 // pred_fallthru
          _
      $region190: #{tpu_custom_call.1} parent=5 // pred_fallthru
        _
    $region6: #{tpu_custom_call.1} parent=1 // loop_footer
      %s23 = sadd.s32 1, %s19
    $region7: #{tpu_custom_call.1} parent=1 // loop_footer_branch
      %18 = sbr.rel target = $region3
    $region8: #{tpu_custom_call.1} parent=1 // loop_exit
      _
    %2496 = vsyncpa [#allocation6], 1
    %s2497 = scalar_lea.sflag [#allocation6], 1
    %2498 = vsyncpa %s2497, 1
  %2499 = vsyncmov [#allocation4]
  %s2500 = vpop.sfrf %2499
  %p2501 = scmp.eq.s32.totalorder %s2500, 0
  %p2502 = pneg %p2501
  %2504 = shalt.err (%p2502)
  %s2505 = scalar_lea.sflag [#allocation4], 1
  %2506 = vsyncmov %s2505
  %s2507 = vpop.sfrf %2506
  %p2508 = scmp.eq.s32.totalorder %s2507, 0
  %p2509 = pneg %p2508
  %2511 = shalt.err (%p2509)
  %s2512 = scalar_lea.sflag [#allocation4], 2
  %2513 = vsyncmov %s2512
  %s2514 = vpop.sfrf %2513
  %p2515 = scmp.eq.s32.totalorder %s2514, 0
  %p2516 = pneg %p2515
  %2518 = shalt.err (%p2516)

</llo_original>
